<compile_context>
chip_gen: v7x
topology: tpu7x:2x2x1
jax: 0.10.0
libtpu: 0.0.40
codegen_flags: <defaults>
</compile_context>

<pallas_src>
import functools

import jax
import jax.numpy as jnp
from jax.experimental import pallas as pl
from jax.experimental.pallas import tpu as pltpu


# ----------------------------------------------------------------------------
# Single-step fused kernel (small in_features: the whole forward in one grid step)
# ----------------------------------------------------------------------------
def _encoder_kernel_fused(x_ref, w1_ref, b1_ref, w2_ref, gamma_ref, beta_ref,
                          wh_ref, bh_ref, eps_ref, z_ref, *, latent_dim):
    # Linear(in_features -> 512) + LeakyReLU(0.2).  Full-K contraction in one MXU pass.
    h = jnp.dot(x_ref[...].astype(jnp.bfloat16), w1_ref[...],
                preferred_element_type=jnp.float32) + b1_ref[...]
    h = jnp.where(h > 0, h, 0.2 * h)

    # Linear(512 -> 512).  b2 omitted: training-mode BatchNorm subtracts the batch
    # mean, so a constant pre-BN bias cancels exactly.
    h = jnp.dot(h.astype(jnp.bfloat16), w2_ref[...],
                preferred_element_type=jnp.float32)

    # BatchNorm1d(512), training mode (batch mean, biased variance, eps=1e-5).
    mean = jnp.mean(h, axis=0, keepdims=True)
    hc = h - mean                                            # reused by var + normalize
    var = jnp.mean(hc * hc, axis=0, keepdims=True)
    scale = gamma_ref[...] * jax.lax.rsqrt(var + 1e-5)       # pre-fused scale
    h = hc * scale + beta_ref[...]

    h = jnp.where(h > 0, h, 0.2 * h)                         # LeakyReLU(0.2)

    # Fused mu|logvar head: one MXU pass over h.
    ml = jnp.dot(h.astype(jnp.bfloat16), wh_ref[...],
                 preferred_element_type=jnp.float32) + bh_ref[...]
    mu = ml[:, :latent_dim]
    logvar = ml[:, latent_dim:]

    # Reparameterization: z = eps * exp(logvar / 2) + mu
    z_ref[...] = eps_ref[...] * jnp.exp(logvar * 0.5) + mu


# ----------------------------------------------------------------------------
# K-streaming kernel (large in_features only): first matmul streamed over K chunks
# ----------------------------------------------------------------------------
def _encoder_kernel_stream(x_ref, w1_ref, b1_ref, w2_ref, gamma_ref, beta_ref,
                           wh_ref, bh_ref, eps_ref, z_ref, acc_ref, *, latent_dim):
    k = pl.program_id(0)

    @pl.when(k == 0)
    def _():
        acc_ref[...] = jnp.zeros_like(acc_ref)

    acc_ref[...] += jnp.dot(x_ref[...].astype(jnp.bfloat16), w1_ref[...],
                            preferred_element_type=jnp.float32)

    @pl.when(k == pl.num_programs(0) - 1)
    def _():
        h = acc_ref[...] + b1_ref[...]
        h = jnp.where(h > 0, h, 0.2 * h)
        h = jnp.dot(h.astype(jnp.bfloat16), w2_ref[...],
                    preferred_element_type=jnp.float32)
        mean = jnp.mean(h, axis=0, keepdims=True)
        hc = h - mean
        var = jnp.mean(hc * hc, axis=0, keepdims=True)
        scale = gamma_ref[...] * jax.lax.rsqrt(var + 1e-5)
        h = hc * scale + beta_ref[...]
        h = jnp.where(h > 0, h, 0.2 * h)
        ml = jnp.dot(h.astype(jnp.bfloat16), wh_ref[...],
                     preferred_element_type=jnp.float32) + bh_ref[...]
        mu = ml[:, :latent_dim]
        logvar = ml[:, latent_dim:]
        z_ref[...] = eps_ref[...] * jnp.exp(logvar * 0.5) + mu


# Switch to K-streaming only when the K-dependent blocks (x + bf16 w1) would be
# large enough that keeping them resident is the VMEM/DMA problem (a few MiB).
_STREAM_THRESHOLD_BYTES = 4 * 1024 * 1024


def _pick_tk(in_features, b, hidden):
    """Largest K-chunk (multiple of 256, divides in_features, >=2 steps) whose
    double-buffered x+w1 footprint stays under ~4 MiB."""
    budget = 4 * 1024 * 1024
    for tk in (4096, 2048, 1024, 512, 256):
        if in_features % tk == 0 and in_features // tk >= 2:
            per_step = 2 * (b * tk * 4 + tk * hidden * 2)   # double-buffered x(f32)+w1(bf16)
            if per_step <= budget:
                return tk
    return in_features


def prepare_params(params):
    """One-time parameter preparation (call OUTSIDE the jitted forward):
    bf16 weights + fused mu|logvar head.  Hoists per-call convert/concat HLOs."""
    (w1, b1, w2, b2, gamma, beta, wmu, bmu, wlv, blv) = params
    del b2  # cancelled exactly by training-mode BatchNorm (mean-subtract)
    w1_b = w1.astype(jnp.bfloat16)
    w2_b = w2.astype(jnp.bfloat16)
    wh = jnp.concatenate([wmu, wlv], axis=1).astype(jnp.bfloat16)   # (hidden, 2*latent)
    bh = jnp.concatenate([bmu, blv], axis=1)                        # (1, 2*latent)
    return (w1_b, b1, w2_b, gamma, beta, wh, bh)


@jax.jit
def encoder_forward(img, prep_params, eps):
    """img: (B, C, H, W) float32. prep_params: output of prepare_params.
    eps: (B, latent_dim) std-normal sample."""
    (w1_b, b1, w2_b, gamma, beta, wh, bh) = prep_params

    b = img.shape[0]
    x = img.reshape(b, -1)                      # matches PyTorch img.view(B, -1), f32
    in_features = x.shape[1]
    hidden = w1_b.shape[1]
    latent = wh.shape[1] // 2

    cparams = pltpu.CompilerParams(
        dimension_semantics=("arbitrary",),
        vmem_limit_bytes=32 * 1024 * 1024,
    )

    k_block_bytes = b * in_features * 4 + in_features * hidden * 2
    use_streaming = k_block_bytes > _STREAM_THRESHOLD_BYTES

    if not use_streaming:
        # ---- single grid step: whole forward fused, no accumulator scratch ----
        in_specs = [
            pl.BlockSpec((b, in_features), lambda k: (0, 0)),       # x (full K)
            pl.BlockSpec((in_features, hidden), lambda k: (0, 0)),  # w1 (full K)
            pl.BlockSpec((1, hidden), lambda k: (0, 0)),            # b1
            pl.BlockSpec((hidden, hidden), lambda k: (0, 0)),       # w2
            pl.BlockSpec((1, hidden), lambda k: (0, 0)),            # gamma
            pl.BlockSpec((1, hidden), lambda k: (0, 0)),            # beta
            pl.BlockSpec((hidden, 2 * latent), lambda k: (0, 0)),   # fused head weight
            pl.BlockSpec((1, 2 * latent), lambda k: (0, 0)),        # fused head bias
            pl.BlockSpec((b, latent), lambda k: (0, 0)),            # eps
        ]
        out_specs = pl.BlockSpec((b, latent), lambda k: (0, 0))
        z = pl.pallas_call(
            functools.partial(_encoder_kernel_fused, latent_dim=latent),
            out_shape=jax.ShapeDtypeStruct((b, latent), jnp.float32),
            grid_spec=pltpu.PrefetchScalarGridSpec(
                num_scalar_prefetch=0,
                grid=(1,),
                in_specs=in_specs,
                out_specs=out_specs,
            ),
            compiler_params=cparams,
        )(x, w1_b, b1, w2_b, gamma, beta, wh, bh, eps)
        return z

    # ---- large in_features: stream first matmul over K chunks ----
    tk = _pick_tk(in_features, b, hidden)
    grid = (in_features // tk,)
    resident = pl.Buffered(1)   # constant-index blocks: no double-buffering
    in_specs = [
        pl.BlockSpec((b, tk), lambda k: (0, k)),                 # x: K chunks
        pl.BlockSpec((tk, hidden), lambda k: (k, 0)),            # w1: K chunks
        pl.BlockSpec((1, hidden), lambda k: (0, 0), pipeline_mode=resident),
        pl.BlockSpec((hidden, hidden), lambda k: (0, 0), pipeline_mode=resident),
        pl.BlockSpec((1, hidden), lambda k: (0, 0), pipeline_mode=resident),
        pl.BlockSpec((1, hidden), lambda k: (0, 0), pipeline_mode=resident),
        pl.BlockSpec((hidden, 2 * latent), lambda k: (0, 0), pipeline_mode=resident),
        pl.BlockSpec((1, 2 * latent), lambda k: (0, 0), pipeline_mode=resident),
        pl.BlockSpec((b, latent), lambda k: (0, 0), pipeline_mode=resident),
    ]
    out_specs = pl.BlockSpec((b, latent), lambda k: (0, 0))
    z = pl.pallas_call(
        functools.partial(_encoder_kernel_stream, latent_dim=latent),
        out_shape=jax.ShapeDtypeStruct((b, latent), jnp.float32),
        grid_spec=pltpu.PrefetchScalarGridSpec(
            num_scalar_prefetch=0,
            grid=grid,
            in_specs=in_specs,
            out_specs=out_specs,
            scratch_shapes=[pltpu.VMEM((b, hidden), jnp.float32)],
        ),
        compiler_params=cparams,
    )(x, w1_b, b1, w2_b, gamma, beta, wh, bh, eps)
    return z


def init_params(key, in_features, hidden, latent_dim):
    """Deterministic init mimicking nn.Linear default (U[-1/sqrt(fan_in), +])."""
    ks = jax.random.split(key, 8)

    def linear(kw, kb, fan_in, fan_out):
        bound = 1.0 / jnp.sqrt(fan_in)
        # stored transposed: (fan_in, fan_out) so kernels do x @ W
        w = jax.random.uniform(kw, (fan_in, fan_out), jnp.float32, -bound, bound)
        bb = jax.random.uniform(kb, (1, fan_out), jnp.float32, -bound, bound)
        return w, bb

    w1, b1 = linear(ks[0], ks[1], in_features, hidden)
    w2, b2 = linear(ks[2], ks[3], hidden, hidden)
    gamma = jnp.ones((1, hidden), jnp.float32)   # BatchNorm1d weight
    beta = jnp.zeros((1, hidden), jnp.float32)   # BatchNorm1d bias
    wmu, bmu = linear(ks[4], ks[5], hidden, latent_dim)
    wlv, blv = linear(ks[6], ks[7], hidden, latent_dim)
    return (w1, b1, w2, b2, gamma, beta, wmu, bmu, wlv, blv)


def _reference_forward(img, params, eps):
    """Pure-JAX f32 reference (includes b2; training-mode BN cancels it, matching the kernel)."""
    (w1, b1, w2, b2, gamma, beta, wmu, bmu, wlv, blv) = params
    x = img.reshape(img.shape[0], -1)
    h = x @ w1 + b1
    h = jnp.where(h > 0, h, 0.2 * h)
    h = h @ w2 + b2
    mean = jnp.mean(h, axis=0, keepdims=True)
    var = jnp.mean((h - mean) ** 2, axis=0, keepdims=True)
    h = (h - mean) / jnp.sqrt(var + 1e-5) * gamma + beta
    h = jnp.where(h > 0, h, 0.2 * h)
    mu = h @ wmu + bmu
    logvar = h @ wlv + blv
    return eps * jnp.exp(logvar / 2) + mu


if __name__ == "__main__":
    # Shapes consistent with the module: opt.channels=1, opt.img_size=16,
    # opt.latent_dim=32, hidden=512 (hardcoded).  Batch 32 keeps it small while a
    # multiple of 8 sublanes.
    # TODO(synk): running_mean/running_var updates of BatchNorm1d are not modeled
    # (forward-only training-mode statistics, as in a single forward pass).
    B, C, H, W = 32, 1, 16, 16
    HIDDEN = 512
    LATENT = 32
    IN_FEATURES = C * H * W

    key = jax.random.PRNGKey(0)
    k_img, k_eps, k_par = jax.random.split(key, 3)

    img = jax.random.normal(k_img, (B, C, H, W), jnp.float32)
    eps = jax.random.normal(k_eps, (B, LATENT), jnp.float32)  # sampled_z ~ N(0,1)
    params = init_params(k_par, IN_FEATURES, HIDDEN, LATENT)

    # One-time bf16 cast + head fusion, hoisted out of the jitted forward.
    prep = prepare_params(params)
    prep = jax.tree_util.tree_map(jax.block_until_ready, prep)

    z = encoder_forward(img, prep, eps)
    z = jax.block_until_ready(z)

    z_ref = _reference_forward(img, params, eps)
    assert z.shape == (B, LATENT)
    # bf16 weight / dot-input quantization => loose-but-safe tolerance vs f32 ref.
    assert jnp.allclose(z, z_ref, atol=1e-1, rtol=5e-2), "mismatch vs reference"

    print("KERNEL_OK")
</pallas_src>

<mosaic_0001>
module attributes {stable_mosaic.version = 11 : i64} {
  func.func @_encoder_kernel_fused(%arg0: i32, %arg1: memref<32x256xf32, #tpu.memory_space<vmem>>, %arg2: memref<256x512xbf16, #tpu.memory_space<vmem>>, %arg3: memref<1x512xf32, #tpu.memory_space<vmem>>, %arg4: memref<512x512xbf16, #tpu.memory_space<vmem>>, %arg5: memref<1x512xf32, #tpu.memory_space<vmem>>, %arg6: memref<1x512xf32, #tpu.memory_space<vmem>>, %arg7: memref<512x64xbf16, #tpu.memory_space<vmem>>, %arg8: memref<1x64xf32, #tpu.memory_space<vmem>>, %arg9: memref<32x32xf32, #tpu.memory_space<vmem>>, %arg10: memref<32x32xf32, #tpu.memory_space<vmem>>) attributes {dimension_semantics = [#tpu.dimension_semantics<arbitrary>], iteration_bounds = array<i64: 1>, scalar_prefetch = 0 : i64, scratch_operands = 0 : i64, tpu.core_type = #tpu.core_type<tc>, window_params = [{pipeline_mode = #tpu.pipeline_mode<synchronous>, transform_indices = @transform_0, window_bounds = array<i64: 32, 256>}, {pipeline_mode = #tpu.pipeline_mode<synchronous>, transform_indices = @transform_1, window_bounds = array<i64: 256, 512>}, {pipeline_mode = #tpu.pipeline_mode<synchronous>, transform_indices = @transform_2, window_bounds = array<i64: 1, 512>}, {pipeline_mode = #tpu.pipeline_mode<synchronous>, transform_indices = @transform_3, window_bounds = array<i64: 512, 512>}, {pipeline_mode = #tpu.pipeline_mode<synchronous>, transform_indices = @transform_4, window_bounds = array<i64: 1, 512>}, {pipeline_mode = #tpu.pipeline_mode<synchronous>, transform_indices = @transform_5, window_bounds = array<i64: 1, 512>}, {pipeline_mode = #tpu.pipeline_mode<synchronous>, transform_indices = @transform_6, window_bounds = array<i64: 512, 64>}, {pipeline_mode = #tpu.pipeline_mode<synchronous>, transform_indices = @transform_7, window_bounds = array<i64: 1, 64>}, {pipeline_mode = #tpu.pipeline_mode<synchronous>, transform_indices = @transform_8, window_bounds = array<i64: 32, 32>}, {pipeline_mode = #tpu.pipeline_mode<synchronous>, transform_indices = @transform_9, window_bounds = array<i64: 32, 32>}]} {
    %c0 = arith.constant 0 : index
    %c0_0 = arith.constant 0 : index
    %0 = vector.load %arg1[%c0, %c0_0] : memref<32x256xf32, #tpu.memory_space<vmem>>, vector<32x256xf32>
    %1 = arith.truncf %0 : vector<32x256xf32> to vector<32x256xbf16>
    %c0_1 = arith.constant 0 : index
    %c0_2 = arith.constant 0 : index
    %2 = vector.load %arg2[%c0_1, %c0_2] : memref<256x512xbf16, #tpu.memory_space<vmem>>, vector<256x512xbf16>
    %cst = arith.constant dense<0.000000e+00> : vector<32x512xf32>
    %3 = tpu.matmul %1, %2, %cst {dimension_numbers = #tpu.dot_dimension_numbers<[1], [0], [0], [1], [0, 0, 1, 1], [], []>} : vector<32x256xbf16>, vector<256x512xbf16>, vector<32x512xf32> -> vector<32x512xf32>
    %c0_3 = arith.constant 0 : index
    %c0_4 = arith.constant 0 : index
    %4 = vector.load %arg3[%c0_3, %c0_4] : memref<1x512xf32, #tpu.memory_space<vmem>>, vector<1x512xf32>
    %5 = vector.broadcast %4 : vector<1x512xf32> to vector<32x512xf32>
    %6 = arith.addf %3, %5 : vector<32x512xf32>
    %cst_5 = arith.constant 0.000000e+00 : f32
    %7 = vector.broadcast %cst_5 : f32 to vector<32x512xf32>
    %8 = arith.cmpf ogt, %6, %7 : vector<32x512xf32>
    %cst_6 = arith.constant 2.000000e-01 : f32
    %9 = vector.broadcast %cst_6 : f32 to vector<32x512xf32>
    %10 = arith.mulf %9, %6 : vector<32x512xf32>
    %11 = arith.select %8, %6, %10 : vector<32x512xi1>, vector<32x512xf32>
    %12 = arith.truncf %11 : vector<32x512xf32> to vector<32x512xbf16>
    %c0_7 = arith.constant 0 : index
    %c0_8 = arith.constant 0 : index
    %13 = vector.load %arg4[%c0_7, %c0_8] : memref<512x512xbf16, #tpu.memory_space<vmem>>, vector<512x512xbf16>
    %cst_9 = arith.constant dense<0.000000e+00> : vector<32x512xf32>
    %14 = tpu.matmul %12, %13, %cst_9 {dimension_numbers = #tpu.dot_dimension_numbers<[1], [0], [0], [1], [0, 0, 1, 1], [], []>} : vector<32x512xbf16>, vector<512x512xbf16>, vector<32x512xf32> -> vector<32x512xf32>
    %cst_10 = arith.constant dense<0.000000e+00> : vector<512xf32>
    %15 = vector.multi_reduction <add>, %14, %cst_10 [0] : vector<32x512xf32> to vector<512xf32>
    %16 = vector.shape_cast %15 : vector<512xf32> to vector<1x512xf32>
    %cst_11 = arith.constant 3.200000e+01 : f32
    %17 = vector.broadcast %cst_11 : f32 to vector<1x512xf32>
    %18 = arith.divf %16, %17 : vector<1x512xf32>
    %19 = vector.broadcast %18 : vector<1x512xf32> to vector<32x512xf32>
    %20 = arith.subf %14, %19 : vector<32x512xf32>
    %21 = arith.mulf %20, %20 : vector<32x512xf32>
    %cst_12 = arith.constant dense<0.000000e+00> : vector<512xf32>
    %22 = vector.multi_reduction <add>, %21, %cst_12 [0] : vector<32x512xf32> to vector<512xf32>
    %23 = vector.shape_cast %22 : vector<512xf32> to vector<1x512xf32>
    %cst_13 = arith.constant 3.200000e+01 : f32
    %24 = vector.broadcast %cst_13 : f32 to vector<1x512xf32>
    %25 = arith.divf %23, %24 : vector<1x512xf32>
    %c0_14 = arith.constant 0 : index
    %c0_15 = arith.constant 0 : index
    %26 = vector.load %arg5[%c0_14, %c0_15] : memref<1x512xf32, #tpu.memory_space<vmem>>, vector<1x512xf32>
    %cst_16 = arith.constant 9.99999974E-6 : f32
    %27 = vector.broadcast %cst_16 : f32 to vector<1x512xf32>
    %28 = arith.addf %25, %27 : vector<1x512xf32>
    %29 = math.rsqrt %28 : vector<1x512xf32>
    %30 = arith.mulf %26, %29 : vector<1x512xf32>
    %31 = vector.broadcast %30 : vector<1x512xf32> to vector<32x512xf32>
    %32 = arith.mulf %20, %31 : vector<32x512xf32>
    %c0_17 = arith.constant 0 : index
    %c0_18 = arith.constant 0 : index
    %33 = vector.load %arg6[%c0_17, %c0_18] : memref<1x512xf32, #tpu.memory_space<vmem>>, vector<1x512xf32>
    %34 = vector.broadcast %33 : vector<1x512xf32> to vector<32x512xf32>
    %35 = arith.addf %32, %34 : vector<32x512xf32>
    %cst_19 = arith.constant 0.000000e+00 : f32
    %36 = vector.broadcast %cst_19 : f32 to vector<32x512xf32>
    %37 = arith.cmpf ogt, %35, %36 : vector<32x512xf32>
    %cst_20 = arith.constant 2.000000e-01 : f32
    %38 = vector.broadcast %cst_20 : f32 to vector<32x512xf32>
    %39 = arith.mulf %38, %35 : vector<32x512xf32>
    %40 = arith.select %37, %35, %39 : vector<32x512xi1>, vector<32x512xf32>
    %41 = arith.truncf %40 : vector<32x512xf32> to vector<32x512xbf16>
    %c0_21 = arith.constant 0 : index
    %c0_22 = arith.constant 0 : index
    %42 = vector.load %arg7[%c0_21, %c0_22] : memref<512x64xbf16, #tpu.memory_space<vmem>>, vector<512x64xbf16>
    %cst_23 = arith.constant dense<0.000000e+00> : vector<32x64xf32>
    %43 = tpu.matmul %41, %42, %cst_23 {dimension_numbers = #tpu.dot_dimension_numbers<[1], [0], [0], [1], [0, 0, 1, 1], [], []>} : vector<32x512xbf16>, vector<512x64xbf16>, vector<32x64xf32> -> vector<32x64xf32>
    %c0_24 = arith.constant 0 : index
    %c0_25 = arith.constant 0 : index
    %44 = vector.load %arg8[%c0_24, %c0_25] : memref<1x64xf32, #tpu.memory_space<vmem>>, vector<1x64xf32>
    %45 = vector.broadcast %44 : vector<1x64xf32> to vector<32x64xf32>
    %46 = arith.addf %43, %45 : vector<32x64xf32>
    %47 = vector.extract_strided_slice %46 {offsets = [0, 0], sizes = [32, 32], strides = [1, 1]} : vector<32x64xf32> to vector<32x32xf32>
    %48 = vector.extract_strided_slice %46 {offsets = [0, 32], sizes = [32, 32], strides = [1, 1]} : vector<32x64xf32> to vector<32x32xf32>
    %c0_26 = arith.constant 0 : index
    %c0_27 = arith.constant 0 : index
    %49 = vector.load %arg9[%c0_26, %c0_27] : memref<32x32xf32, #tpu.memory_space<vmem>>, vector<32x32xf32>
    %cst_28 = arith.constant 5.000000e-01 : f32
    %50 = vector.broadcast %cst_28 : f32 to vector<32x32xf32>
    %51 = arith.mulf %48, %50 : vector<32x32xf32>
    %52 = math.exp %51 : vector<32x32xf32>
    %53 = arith.mulf %49, %52 : vector<32x32xf32>
    %54 = arith.addf %53, %47 : vector<32x32xf32>
    %c0_29 = arith.constant 0 : index
    %c0_30 = arith.constant 0 : index
    %55 = vector.load %arg10[%c0_29, %c0_30] : memref<32x32xf32, #tpu.memory_space<vmem>>, vector<32x32xf32>
    tpu.vector_store %arg10[%c0_29, %c0_30], %54 {strides = array<i32>} : memref<32x32xf32, #tpu.memory_space<vmem>>, vector<32x32xf32>,
    return
  }
  func.func @transform_0(%arg0: i32) -> (i32, i32) {
    %c0_i32 = arith.constant 0 : i32
    %c0_i32_0 = arith.constant 0 : i32
    %c0_i32_1 = arith.constant 0 : i32
    return %c0_i32, %c0_i32_0 : i32, i32
  }
  func.func @transform_1(%arg0: i32) -> (i32, i32) {
    %c0_i32 = arith.constant 0 : i32
    %c0_i32_0 = arith.constant 0 : i32
    %c0_i32_1 = arith.constant 0 : i32
    return %c0_i32, %c0_i32_0 : i32, i32
  }
  func.func @transform_2(%arg0: i32) -> (i32, i32) {
    %c0_i32 = arith.constant 0 : i32
    %c0_i32_0 = arith.constant 0 : i32
    %c0_i32_1 = arith.constant 0 : i32
    return %c0_i32, %c0_i32_0 : i32, i32
  }
  func.func @transform_3(%arg0: i32) -> (i32, i32) {
    %c0_i32 = arith.constant 0 : i32
    %c0_i32_0 = arith.constant 0 : i32
    %c0_i32_1 = arith.constant 0 : i32
    return %c0_i32, %c0_i32_0 : i32, i32
  }
  func.func @transform_4(%arg0: i32) -> (i32, i32) {
    %c0_i32 = arith.constant 0 : i32
    %c0_i32_0 = arith.constant 0 : i32
    %c0_i32_1 = arith.constant 0 : i32
    return %c0_i32, %c0_i32_0 : i32, i32
  }
  func.func @transform_5(%arg0: i32) -> (i32, i32) {
    %c0_i32 = arith.constant 0 : i32
    %c0_i32_0 = arith.constant 0 : i32
    %c0_i32_1 = arith.constant 0 : i32
    return %c0_i32, %c0_i32_0 : i32, i32
  }
  func.func @transform_6(%arg0: i32) -> (i32, i32) {
    %c0_i32 = arith.constant 0 : i32
    %c0_i32_0 = arith.constant 0 : i32
    %c0_i32_1 = arith.constant 0 : i32
    return %c0_i32, %c0_i32_0 : i32, i32
  }
  func.func @transform_7(%arg0: i32) -> (i32, i32) {
    %c0_i32 = arith.constant 0 : i32
    %c0_i32_0 = arith.constant 0 : i32
    %c0_i32_1 = arith.constant 0 : i32
    return %c0_i32, %c0_i32_0 : i32, i32
  }
  func.func @transform_8(%arg0: i32) -> (i32, i32) {
    %c0_i32 = arith.constant 0 : i32
    %c0_i32_0 = arith.constant 0 : i32
    %c0_i32_1 = arith.constant 0 : i32
    return %c0_i32, %c0_i32_0 : i32, i32
  }
  func.func @transform_9(%arg0: i32) -> (i32, i32) {
    %c0_i32 = arith.constant 0 : i32
    %c0_i32_0 = arith.constant 0 : i32
    %c0_i32_1 = arith.constant 0 : i32
    return %c0_i32, %c0_i32_0 : i32, i32
  }
}

</mosaic_0001>

<llo_original>
// kernel: encoder_forward.1
$region0: #{encoder_forward.1}
  #allocation0 [shape = 'u32[]', space=smem, size = 0x4, offset = 0x4, fixed_abs, tag = 'smem constant byte address 0x4 - core index']
  #allocation1 [shape = 'u32[144,128]{1,0:T(1,128)}', space=vmem, size = 0x12000, scoped, tag = 'internal scratch']
  %s0 = inlined_call_operand.vmem [shape: f32[32,256], index: 0, kind: input, shape index: {}]
  %s1 = inlined_call_operand.vmem [shape: bf16[256,512], index: 1, kind: input, shape index: {}]
  %s2 = inlined_call_operand.vmem [shape: f32[1,512], index: 2, kind: input, shape index: {}]
  %s3 = inlined_call_operand.hbm [shape: bf16[512,512], index: 3, kind: input, shape index: {}]
  %s4 = inlined_call_operand.vmem [shape: f32[1,512], index: 4, kind: input, shape index: {}]
  %s5 = inlined_call_operand.vmem [shape: f32[1,512], index: 5, kind: input, shape index: {}]
  %s6 = inlined_call_operand.vmem [shape: bf16[512,64], index: 6, kind: input, shape index: {}]
  %s7 = inlined_call_operand.vmem [shape: f32[1,64], index: 7, kind: input, shape index: {}]
  %s8 = inlined_call_operand.vmem [shape: f32[32,32], index: 8, kind: input, shape index: {}]
  %s9 = inlined_call_operand.hbm [shape: f32[32,32], index: 9, kind: output, shape index: {}]
  %s10 = sld [smem:[#allocation0]]
  $region50: #{encoder_forward.1} parent=0
    _
  %s12 = ssub.s32 1, %s10
  %s13 = scalar_select 0, %s12, %s10
  $region1: #{encoder_forward.1} parent=0
    #allocation2 [shape = 'u8[524288]{0}', space=vmem, size = 0x80000, scoped, tag = 'input window, operand 3, single buffered']
    #allocation3 [shape = 's32[1]{0}', space=sflag, size = 0x4, scoped, tag = 'scoped memory for encoder_forward.1']
    #allocation4 [shape = 's32[1]{0}', space=sflag, size = 0x4, scoped, tag = 'scoped memory for encoder_forward.1']
    #allocation5 [shape = 'u8[16384]{0}', space=vmem, size = 0x4000, scoped, tag = 'output window, operand 0, single buffered']
    %14 = vsyncpa [#allocation3], 0
    %15 = vsyncpa [#allocation4], 0
    // Predicated region
    $region2: #{encoder_forward.1} parent=1 // pred_check
      _
    $region3: #{encoder_forward.1} parent=1 // pred_check_branch
      %17 = sbr.rel (0) target = $region5
    $region4: #{encoder_forward.1} parent=1 // pred_region
      _
    $region5: #{encoder_forward.1} parent=1 // pred_fallthru
      _
    // Predicated region
    $region6: #{encoder_forward.1} parent=1 // pred_check
      _
    $region7: #{encoder_forward.1} parent=1 // pred_check_branch
      %19 = sbr.rel (0) target = $region9
    $region8: #{encoder_forward.1} parent=1 // pred_region
      _
    $region9: #{encoder_forward.1} parent=1 // pred_fallthru
      _
    // Predicated region
    $region10: #{encoder_forward.1} parent=1 // pred_check
      _
    $region11: #{encoder_forward.1} parent=1 // pred_check_branch
      %21 = sbr.rel (0) target = $region13
    $region12: #{encoder_forward.1} parent=1 // pred_region
      _
    $region13: #{encoder_forward.1} parent=1 // pred_fallthru
      _
    // Predicated region
    $region14: #{encoder_forward.1} parent=1 // pred_check
      _
    $region15: #{encoder_forward.1} parent=1 // pred_check_branch
      %23 = sbr.rel (0) target = $region17
    $region16: #{encoder_forward.1} parent=1 // pred_region
      %s25 = ssub.s32 16384, 16384
      %26 = vsyncadd [#allocation3], %s25
      %s27 = sshll.u32 [#allocation2], 4
      %s28 = int_to_ptr.vmem [resolvable:$true] %s27
      %33 = dma.hbm_to_vmem [thread:$0]  %s3, 16384, %s28, [#allocation3], 256, 256, 16
    $region17: #{encoder_forward.1} parent=1 // pred_fallthru
      _
    // Predicated region
    $region18: #{encoder_forward.1} parent=1 // pred_check
      _
    $region19: #{encoder_forward.1} parent=1 // pred_check_branch
      %35 = sbr.rel (0) target = $region21
    $region20: #{encoder_forward.1} parent=1 // pred_region
      _
    $region21: #{encoder_forward.1} parent=1 // pred_fallthru
      _
    // Predicated region
    $region22: #{encoder_forward.1} parent=1 // pred_check
      _
    $region23: #{encoder_forward.1} parent=1 // pred_check_branch
      %37 = sbr.rel (0) target = $region25
    $region24: #{encoder_forward.1} parent=1 // pred_region
      _
    $region25: #{encoder_forward.1} parent=1 // pred_fallthru
      _
    // Predicated region
    $region26: #{encoder_forward.1} parent=1 // pred_check
      _
    $region27: #{encoder_forward.1} parent=1 // pred_check_branch
      %39 = sbr.rel (0) target = $region29
    $region28: #{encoder_forward.1} parent=1 // pred_region
      _
    $region29: #{encoder_forward.1} parent=1 // pred_fallthru
      _
    // Predicated region
    $region30: #{encoder_forward.1} parent=1 // pred_check
      _
    $region31: #{encoder_forward.1} parent=1 // pred_check_branch
      %41 = sbr.rel (0) target = $region33
    $region32: #{encoder_forward.1} parent=1 // pred_region
      _
    $region33: #{encoder_forward.1} parent=1 // pred_fallthru
      _
    // Predicated region
    $region34: #{encoder_forward.1} parent=1 // pred_check
      _
    $region35: #{encoder_forward.1} parent=1 // pred_check_branch
      %43 = sbr.rel (0) target = $region37
    $region36: #{encoder_forward.1} parent=1 // pred_region
      _
    $region37: #{encoder_forward.1} parent=1 // pred_fallthru
      _
    // Predicated region
    $region38: #{encoder_forward.1} parent=1 // pred_check
      _
    $region39: #{encoder_forward.1} parent=1 // pred_check_branch
      %45 = sbr.rel (0) target = $region41
    $region40: #{encoder_forward.1} parent=1 // pred_region
      %46 = dma.done [#allocation3], 16384
    $region41: #{encoder_forward.1} parent=1 // pred_fallthru
      _
    %v48 = vld [vmem:[%s0] sm:$0xff]
    %v49 = vld [vmem:[%s0 + $0x8] sm:$0xff]
    %v50 = vld [vmem:[%s0 + $0x10] sm:$0xff]
    %v51 = vld [vmem:[%s0 + $0x18] sm:$0xff]
    %v52 = vld [vmem:[%s0 + $0x20] sm:$0xff]
    %v53 = vld [vmem:[%s0 + $0x28] sm:$0xff]
    %v54 = vld [vmem:[%s0 + $0x30] sm:$0xff]
    %v55 = vld [vmem:[%s0 + $0x38] sm:$0xff]
    %v56 = vpack.c.bf16 %v50, %v48
    %v57 = vpack.c.bf16 %v51, %v49
    %v58 = vpack.c.bf16 %v54, %v52
    %v59 = vpack.c.bf16 %v55, %v53
    %v60 = vld [vmem:[%s1] sm:$0xff]
    %v61 = vld [vmem:[%s1 + $0x8] sm:$0xff]
    %v62 = vld [vmem:[%s1 + $0x10] sm:$0xff]
    %v63 = vld [vmem:[%s1 + $0x18] sm:$0xff]
    %v64 = vld [vmem:[%s1 + $0x20] sm:$0xff]
    %v65 = vld [vmem:[%s1 + $0x28] sm:$0xff]
    %v66 = vld [vmem:[%s1 + $0x30] sm:$0xff]
    %v67 = vld [vmem:[%s1 + $0x38] sm:$0xff]
    %v68 = vld [vmem:[%s1 + $0x40] sm:$0xff]
    %v69 = vld [vmem:[%s1 + $0x48] sm:$0xff]
    %v70 = vld [vmem:[%s1 + $0x50] sm:$0xff]
    %v71 = vld [vmem:[%s1 + $0x58] sm:$0xff]
    %v72 = vld [vmem:[%s1 + $0x60] sm:$0xff]
    %v73 = vld [vmem:[%s1 + $0x68] sm:$0xff]
    %v74 = vld [vmem:[%s1 + $0x70] sm:$0xff]
    %v75 = vld [vmem:[%s1 + $0x78] sm:$0xff]
    %v76 = vld [vmem:[%s1 + $0x80] sm:$0xff]
    %v77 = vld [vmem:[%s1 + $0x88] sm:$0xff]
    %v78 = vld [vmem:[%s1 + $0x90] sm:$0xff]
    %v79 = vld [vmem:[%s1 + $0x98] sm:$0xff]
    %v80 = vld [vmem:[%s1 + $0xa0] sm:$0xff]
    %v81 = vld [vmem:[%s1 + $0xa8] sm:$0xff]
    %v82 = vld [vmem:[%s1 + $0xb0] sm:$0xff]
    %v83 = vld [vmem:[%s1 + $0xb8] sm:$0xff]
    %v84 = vld [vmem:[%s1 + $0xc0] sm:$0xff]
    %v85 = vld [vmem:[%s1 + $0xc8] sm:$0xff]
    %v86 = vld [vmem:[%s1 + $0xd0] sm:$0xff]
    %v87 = vld [vmem:[%s1 + $0xd8] sm:$0xff]
    %v88 = vld [vmem:[%s1 + $0xe0] sm:$0xff]
    %v89 = vld [vmem:[%s1 + $0xe8] sm:$0xff]
    %v90 = vld [vmem:[%s1 + $0xf0] sm:$0xff]
    %v91 = vld [vmem:[%s1 + $0xf8] sm:$0xff]
    %v92 = vld [vmem:[%s1 + $0x100] sm:$0xff]
    %v93 = vld [vmem:[%s1 + $0x108] sm:$0xff]
    %v94 = vld [vmem:[%s1 + $0x110] sm:$0xff]
    %v95 = vld [vmem:[%s1 + $0x118] sm:$0xff]
    %v96 = vld [vmem:[%s1 + $0x120] sm:$0xff]
    %v97 = vld [vmem:[%s1 + $0x128] sm:$0xff]
    %v98 = vld [vmem:[%s1 + $0x130] sm:$0xff]
    %v99 = vld [vmem:[%s1 + $0x138] sm:$0xff]
    %v100 = vld [vmem:[%s1 + $0x140] sm:$0xff]
    %v101 = vld [vmem:[%s1 + $0x148] sm:$0xff]
    %v102 = vld [vmem:[%s1 + $0x150] sm:$0xff]
    %v103 = vld [vmem:[%s1 + $0x158] sm:$0xff]
    %v104 = vld [vmem:[%s1 + $0x160] sm:$0xff]
    %v105 = vld [vmem:[%s1 + $0x168] sm:$0xff]
    %v106 = vld [vmem:[%s1 + $0x170] sm:$0xff]
    %v107 = vld [vmem:[%s1 + $0x178] sm:$0xff]
    %v108 = vld [vmem:[%s1 + $0x180] sm:$0xff]
    %v109 = vld [vmem:[%s1 + $0x188] sm:$0xff]
    %v110 = vld [vmem:[%s1 + $0x190] sm:$0xff]
    %v111 = vld [vmem:[%s1 + $0x198] sm:$0xff]
    %v112 = vld [vmem:[%s1 + $0x1a0] sm:$0xff]
    %v113 = vld [vmem:[%s1 + $0x1a8] sm:$0xff]
    %v114 = vld [vmem:[%s1 + $0x1b0] sm:$0xff]
    %v115 = vld [vmem:[%s1 + $0x1b8] sm:$0xff]
    %v116 = vld [vmem:[%s1 + $0x1c0] sm:$0xff]
    %v117 = vld [vmem:[%s1 + $0x1c8] sm:$0xff]
    %v118 = vld [vmem:[%s1 + $0x1d0] sm:$0xff]
    %v119 = vld [vmem:[%s1 + $0x1d8] sm:$0xff]
    %v120 = vld [vmem:[%s1 + $0x1e0] sm:$0xff]
    %v121 = vld [vmem:[%s1 + $0x1e8] sm:$0xff]
    %v122 = vld [vmem:[%s1 + $0x1f0] sm:$0xff]
    %v123 = vld [vmem:[%s1 + $0x1f8] sm:$0xff]
    %v124 = vld [vmem:[%s2] sm:$0xf]
    %v126 = vlaneseq
    %v127 = vshrl.u32 %v126, 7
    %v128 = vsub.s32 0, %v127
    %v129 = vrot.slane %v124, %v128
    %v130 = vlaneseq
    %v131 = vshrl.u32 %v130, 7
    %v132 = vsub.s32 1, %v131
    %v133 = vrot.slane %v124, %v132
    %v134 = vlaneseq
    %v135 = vshrl.u32 %v134, 7
    %v136 = vsub.s32 2, %v135
    %v137 = vrot.slane %v124, %v136
    %v138 = vlaneseq
    %v139 = vshrl.u32 %v138, 7
    %v140 = vsub.s32 3, %v139
    %v141 = vrot.slane %v124, %v140
    %v210 = vunpack.c.l.b16 %v60
    %v211 = vunpack.c.h.b16 %v60
    %v212 = vunpack.c.l.b16 %v61
    %v213 = vunpack.c.h.b16 %v61
    %v214 = vunpack.c.l.b16 %v62
    %v215 = vunpack.c.h.b16 %v62
    %v216 = vunpack.c.l.b16 %v63
    %v217 = vunpack.c.h.b16 %v63
    %v218 = vunpack.c.l.b16 %v64
    %v219 = vunpack.c.h.b16 %v64
    %v220 = vunpack.c.l.b16 %v65
    %v221 = vunpack.c.h.b16 %v65
    %v222 = vunpack.c.l.b16 %v66
    %v223 = vunpack.c.h.b16 %v66
    %v224 = vunpack.c.l.b16 %v67
    %v225 = vunpack.c.h.b16 %v67
    %v226 = vunpack.c.l.b16 %v68
    %v227 = vunpack.c.h.b16 %v68
    %v228 = vunpack.c.l.b16 %v69
    %v229 = vunpack.c.h.b16 %v69
    %v230 = vunpack.c.l.b16 %v70
    %v231 = vunpack.c.h.b16 %v70
    %v232 = vunpack.c.l.b16 %v71
    %v233 = vunpack.c.h.b16 %v71
    %v234 = vunpack.c.l.b16 %v72
    %v235 = vunpack.c.h.b16 %v72
    %v236 = vunpack.c.l.b16 %v73
    %v237 = vunpack.c.h.b16 %v73
    %v238 = vunpack.c.l.b16 %v74
    %v239 = vunpack.c.h.b16 %v74
    %v240 = vunpack.c.l.b16 %v75
    %v241 = vunpack.c.h.b16 %v75
    %v242 = vunpack.c.l.b16 %v76
    %v243 = vunpack.c.h.b16 %v76
    %v244 = vunpack.c.l.b16 %v77
    %v245 = vunpack.c.h.b16 %v77
    %v246 = vunpack.c.l.b16 %v78
    %v247 = vunpack.c.h.b16 %v78
    %v248 = vunpack.c.l.b16 %v79
    %v249 = vunpack.c.h.b16 %v79
    %v250 = vunpack.c.l.b16 %v80
    %v251 = vunpack.c.h.b16 %v80
    %v252 = vunpack.c.l.b16 %v81
    %v253 = vunpack.c.h.b16 %v81
    %v254 = vunpack.c.l.b16 %v82
    %v255 = vunpack.c.h.b16 %v82
    %v256 = vunpack.c.l.b16 %v83
    %v257 = vunpack.c.h.b16 %v83
    %v258 = vunpack.c.l.b16 %v84
    %v259 = vunpack.c.h.b16 %v84
    %v260 = vunpack.c.l.b16 %v85
    %v261 = vunpack.c.h.b16 %v85
    %v262 = vunpack.c.l.b16 %v86
    %v263 = vunpack.c.h.b16 %v86
    %v264 = vunpack.c.l.b16 %v87
    %v265 = vunpack.c.h.b16 %v87
    %v266 = vunpack.c.l.b16 %v88
    %v267 = vunpack.c.h.b16 %v88
    %v268 = vunpack.c.l.b16 %v89
    %v269 = vunpack.c.h.b16 %v89
    %v270 = vunpack.c.l.b16 %v90
    %v271 = vunpack.c.h.b16 %v90
    %v272 = vunpack.c.l.b16 %v91
    %v273 = vunpack.c.h.b16 %v91
    %v274 = vunpack.c.l.b16 %v92
    %v275 = vunpack.c.h.b16 %v92
    %v276 = vunpack.c.l.b16 %v93
    %v277 = vunpack.c.h.b16 %v93
    %v278 = vunpack.c.l.b16 %v94
    %v279 = vunpack.c.h.b16 %v94
    %v280 = vunpack.c.l.b16 %v95
    %v281 = vunpack.c.h.b16 %v95
    %v282 = vunpack.c.l.b16 %v96
    %v283 = vunpack.c.h.b16 %v96
    %v284 = vunpack.c.l.b16 %v97
    %v285 = vunpack.c.h.b16 %v97
    %v286 = vunpack.c.l.b16 %v98
    %v287 = vunpack.c.h.b16 %v98
    %v288 = vunpack.c.l.b16 %v99
    %v289 = vunpack.c.h.b16 %v99
    %v290 = vunpack.c.l.b16 %v100
    %v291 = vunpack.c.h.b16 %v100
    %v292 = vunpack.c.l.b16 %v101
    %v293 = vunpack.c.h.b16 %v101
    %v294 = vunpack.c.l.b16 %v102
    %v295 = vunpack.c.h.b16 %v102
    %v296 = vunpack.c.l.b16 %v103
    %v297 = vunpack.c.h.b16 %v103
    %v298 = vunpack.c.l.b16 %v104
    %v299 = vunpack.c.h.b16 %v104
    %v300 = vunpack.c.l.b16 %v105
    %v301 = vunpack.c.h.b16 %v105
    %v302 = vunpack.c.l.b16 %v106
    %v303 = vunpack.c.h.b16 %v106
    %v304 = vunpack.c.l.b16 %v107
    %v305 = vunpack.c.h.b16 %v107
    %v306 = vunpack.c.l.b16 %v108
    %v307 = vunpack.c.h.b16 %v108
    %v308 = vunpack.c.l.b16 %v109
    %v309 = vunpack.c.h.b16 %v109
    %v310 = vunpack.c.l.b16 %v110
    %v311 = vunpack.c.h.b16 %v110
    %v312 = vunpack.c.l.b16 %v111
    %v313 = vunpack.c.h.b16 %v111
    %v314 = vunpack.c.l.b16 %v112
    %v315 = vunpack.c.h.b16 %v112
    %v316 = vunpack.c.l.b16 %v113
    %v317 = vunpack.c.h.b16 %v113
    %v318 = vunpack.c.l.b16 %v114
    %v319 = vunpack.c.h.b16 %v114
    %v320 = vunpack.c.l.b16 %v115
    %v321 = vunpack.c.h.b16 %v115
    %v322 = vunpack.c.l.b16 %v116
    %v323 = vunpack.c.h.b16 %v116
    %v324 = vunpack.c.l.b16 %v117
    %v325 = vunpack.c.h.b16 %v117
    %v326 = vunpack.c.l.b16 %v118
    %v327 = vunpack.c.h.b16 %v118
    %v328 = vunpack.c.l.b16 %v119
    %v329 = vunpack.c.h.b16 %v119
    %v330 = vunpack.c.l.b16 %v120
    %v331 = vunpack.c.h.b16 %v120
    %v332 = vunpack.c.l.b16 %v121
    %v333 = vunpack.c.h.b16 %v121
    %v334 = vunpack.c.l.b16 %v122
    %v335 = vunpack.c.h.b16 %v122
    %v336 = vunpack.c.l.b16 %v123
    %v337 = vunpack.c.h.b16 %v123
    %v338 = vpack.c.b16 %v214, %v210
    %v339 = vpack.c.b16 %v215, %v211
    %v340 = vpack.c.b16 %v216, %v212
    %v341 = vpack.c.b16 %v217, %v213
    %v342 = vpack.c.b16 %v222, %v218
    %v343 = vpack.c.b16 %v223, %v219
    %v344 = vpack.c.b16 %v224, %v220
    %v345 = vpack.c.b16 %v225, %v221
    %v346 = vpack.c.b16 %v230, %v226
    %v347 = vpack.c.b16 %v231, %v227
    %v348 = vpack.c.b16 %v232, %v228
    %v349 = vpack.c.b16 %v233, %v229
    %v350 = vpack.c.b16 %v238, %v234
    %v351 = vpack.c.b16 %v239, %v235
    %v352 = vpack.c.b16 %v240, %v236
    %v353 = vpack.c.b16 %v241, %v237
    %v354 = vpack.c.b16 %v246, %v242
    %v355 = vpack.c.b16 %v247, %v243
    %v356 = vpack.c.b16 %v248, %v244
    %v357 = vpack.c.b16 %v249, %v245
    %v358 = vpack.c.b16 %v254, %v250
    %v359 = vpack.c.b16 %v255, %v251
    %v360 = vpack.c.b16 %v256, %v252
    %v361 = vpack.c.b16 %v257, %v253
    %v362 = vpack.c.b16 %v262, %v258
    %v363 = vpack.c.b16 %v263, %v259
    %v364 = vpack.c.b16 %v264, %v260
    %v365 = vpack.c.b16 %v265, %v261
    %v366 = vpack.c.b16 %v270, %v266
    %v367 = vpack.c.b16 %v271, %v267
    %v368 = vpack.c.b16 %v272, %v268
    %v369 = vpack.c.b16 %v273, %v269
    %v370 = vpack.c.b16 %v278, %v274
    %v371 = vpack.c.b16 %v279, %v275
    %v372 = vpack.c.b16 %v280, %v276
    %v373 = vpack.c.b16 %v281, %v277
    %v374 = vpack.c.b16 %v286, %v282
    %v375 = vpack.c.b16 %v287, %v283
    %v376 = vpack.c.b16 %v288, %v284
    %v377 = vpack.c.b16 %v289, %v285
    %v378 = vpack.c.b16 %v294, %v290
    %v379 = vpack.c.b16 %v295, %v291
    %v380 = vpack.c.b16 %v296, %v292
    %v381 = vpack.c.b16 %v297, %v293
    %v382 = vpack.c.b16 %v302, %v298
    %v383 = vpack.c.b16 %v303, %v299
    %v384 = vpack.c.b16 %v304, %v300
    %v385 = vpack.c.b16 %v305, %v301
    %v386 = vpack.c.b16 %v310, %v306
    %v387 = vpack.c.b16 %v311, %v307
    %v388 = vpack.c.b16 %v312, %v308
    %v389 = vpack.c.b16 %v313, %v309
    %v390 = vpack.c.b16 %v318, %v314
    %v391 = vpack.c.b16 %v319, %v315
    %v392 = vpack.c.b16 %v320, %v316
    %v393 = vpack.c.b16 %v321, %v317
    %v394 = vpack.c.b16 %v326, %v322
    %v395 = vpack.c.b16 %v327, %v323
    %v396 = vpack.c.b16 %v328, %v324
    %v397 = vpack.c.b16 %v329, %v325
    %v398 = vpack.c.b16 %v334, %v330
    %v399 = vpack.c.b16 %v335, %v331
    %v400 = vpack.c.b16 %v336, %v332
    %v401 = vpack.c.b16 %v337, %v333
    %466 = vmatprep.subr.bf16.mxu0 %v339
    %467 = vmatpush1.bf16.msra.mxu0 %v338
    %468 = vmatprep.subr.bf16.mxu0 %v343
    %469 = vmatpush1.bf16.msra.mxu0 %v342
    %470 = vmatprep.subr.bf16.mxu0 %v347
    %471 = vmatpush1.bf16.msra.mxu0 %v346
    %472 = vmatprep.subr.bf16.mxu0 %v351
    %473 = vmatpush1.bf16.msra.mxu0 %v350
    %474 = vmatprep.subr.bf16.mxu0 %v355
    %475 = vmatpush1.bf16.msra.mxu0 %v354
    %476 = vmatprep.subr.bf16.mxu0 %v359
    %477 = vmatpush1.bf16.msra.mxu0 %v358
    %478 = vmatprep.subr.bf16.mxu0 %v363
    %479 = vmatpush1.bf16.msra.mxu0 %v362
    %480 = vmatprep.subr.bf16.mxu0 %v367
    %481 = vmatpush1.bf16.msra.mxu0 %v366
    %482 = vmatprep.subr.bf16.mxu0 %v371
    %483 = vmatpush1.bf16.msra.mxu0 %v370
    %484 = vmatprep.subr.bf16.mxu0 %v375
    %485 = vmatpush1.bf16.msra.mxu0 %v374
    %486 = vmatprep.subr.bf16.mxu0 %v379
    %487 = vmatpush1.bf16.msra.mxu0 %v378
    %488 = vmatprep.subr.bf16.mxu0 %v383
    %489 = vmatpush1.bf16.msra.mxu0 %v382
    %490 = vmatprep.subr.bf16.mxu0 %v387
    %491 = vmatpush1.bf16.msra.mxu0 %v386
    %492 = vmatprep.subr.bf16.mxu0 %v391
    %493 = vmatpush1.bf16.msra.mxu0 %v390
    %494 = vmatprep.subr.bf16.mxu0 %v395
    %495 = vmatpush1.bf16.msra.mxu0 %v394
    %496 = vmatprep.subr.bf16.mxu0 %v399
    %497 = vmatpush1.bf16.msra.mxu0 %v398
    %498 = vmatprep.mubr.bf16.mxu0 %v57
    %499 = vmatmul.mubr.bf16.gmra.mrb[0].mxu0 %v56
    %v500 = vpop.f32.mrb[0].mxu0
    %v501 = vadd.f32 %v129, %v500
    %v502 = vpop.f32.mrb[0].mxu0
    %v503 = vadd.f32 %v133, %v502
    %v504 = vpop.f32.mrb[0].mxu0
    %v505 = vadd.f32 %v129, %v504
    %v506 = vpop.f32.mrb[0].mxu0
    %v507 = vadd.f32 %v133, %v506
    %508 = vmatprep.mubr.bf16.mxu0 %v59
    %509 = vmatmul.mubr.bf16.gmra.mrb[0].mxu0 %v58
    %v510 = vpop.f32.mrb[0].mxu0
    %v511 = vadd.f32 %v129, %v510
    %v512 = vpop.f32.mrb[0].mxu0
    %v513 = vadd.f32 %v133, %v512
    %v514 = vpop.f32.mrb[0].mxu0
    %v515 = vadd.f32 %v129, %v514
    %v516 = vpop.f32.mrb[0].mxu0
    %v517 = vadd.f32 %v133, %v516
    %518 = vdwg.mxu0
    %519 = vmatprep.subr.bf16.mxu0 %v341
    %520 = vmatpush1.bf16.msra.mxu0 %v340
    %521 = vmatprep.subr.bf16.mxu0 %v345
    %522 = vmatpush1.bf16.msra.mxu0 %v344
    %523 = vmatprep.subr.bf16.mxu0 %v349
    %524 = vmatpush1.bf16.msra.mxu0 %v348
    %525 = vmatprep.subr.bf16.mxu0 %v353
    %526 = vmatpush1.bf16.msra.mxu0 %v352
    %527 = vmatprep.subr.bf16.mxu0 %v357
    %528 = vmatpush1.bf16.msra.mxu0 %v356
    %529 = vmatprep.subr.bf16.mxu0 %v361
    %530 = vmatpush1.bf16.msra.mxu0 %v360
    %531 = vmatprep.subr.bf16.mxu0 %v365
    %532 = vmatpush1.bf16.msra.mxu0 %v364
    %533 = vmatprep.subr.bf16.mxu0 %v369
    %534 = vmatpush1.bf16.msra.mxu0 %v368
    %535 = vmatprep.subr.bf16.mxu0 %v373
    %536 = vmatpush1.bf16.msra.mxu0 %v372
    %537 = vmatprep.subr.bf16.mxu0 %v377
    %538 = vmatpush1.bf16.msra.mxu0 %v376
    %539 = vmatprep.subr.bf16.mxu0 %v381
    %540 = vmatpush1.bf16.msra.mxu0 %v380
    %541 = vmatprep.subr.bf16.mxu0 %v385
    %542 = vmatpush1.bf16.msra.mxu0 %v384
    %543 = vmatprep.subr.bf16.mxu0 %v389
    %544 = vmatpush1.bf16.msra.mxu0 %v388
    %545 = vmatprep.subr.bf16.mxu0 %v393
    %546 = vmatpush1.bf16.msra.mxu0 %v392
    %547 = vmatprep.subr.bf16.mxu0 %v397
    %548 = vmatpush1.bf16.msra.mxu0 %v396
    %549 = vmatprep.subr.bf16.mxu0 %v401
    %550 = vmatpush1.bf16.msra.mxu0 %v400
    %551 = vmatprep.mubr.bf16.mxu0 %v57
    %552 = vmatmul.mubr.bf16.gmra.mrb[0].mxu0 %v56
    %v553 = vpop.f32.mrb[0].mxu0
    %v554 = vadd.f32 %v137, %v553
    %v555 = vpop.f32.mrb[0].mxu0
    %v556 = vadd.f32 %v141, %v555
    %v557 = vpop.f32.mrb[0].mxu0
    %v558 = vadd.f32 %v137, %v557
    %v559 = vpop.f32.mrb[0].mxu0
    %v560 = vadd.f32 %v141, %v559
    %561 = vmatprep.mubr.bf16.mxu0 %v59
    %562 = vmatmul.mubr.bf16.gmra.mrb[0].mxu0 %v58
    %v563 = vpop.f32.mrb[0].mxu0
    %v564 = vadd.f32 %v137, %v563
    %v565 = vpop.f32.mrb[0].mxu0
    %v566 = vadd.f32 %v141, %v565
    %v567 = vpop.f32.mrb[0].mxu0
    %v568 = vadd.f32 %v137, %v567
    %v569 = vpop.f32.mrb[0].mxu0
    %v570 = vadd.f32 %v141, %v569
    %571 = vdwg.mxu0
    %vm572 = vcmp.gt.f32.partialorder %v501, 0.0
    %vm573 = vcmp.gt.f32.partialorder %v503, 0.0
    %vm574 = vcmp.gt.f32.partialorder %v554, 0.0
    %vm575 = vcmp.gt.f32.partialorder %v556, 0.0
    %vm576 = vcmp.gt.f32.partialorder %v505, 0.0
    %vm577 = vcmp.gt.f32.partialorder %v507, 0.0
    %vm578 = vcmp.gt.f32.partialorder %v558, 0.0
    %vm579 = vcmp.gt.f32.partialorder %v560, 0.0
    %vm580 = vcmp.gt.f32.partialorder %v511, 0.0
    %vm581 = vcmp.gt.f32.partialorder %v513, 0.0
    %vm582 = vcmp.gt.f32.partialorder %v564, 0.0
    %vm583 = vcmp.gt.f32.partialorder %v566, 0.0
    %vm584 = vcmp.gt.f32.partialorder %v515, 0.0
    %vm585 = vcmp.gt.f32.partialorder %v517, 0.0
    %vm586 = vcmp.gt.f32.partialorder %v568, 0.0
    %vm587 = vcmp.gt.f32.partialorder %v570, 0.0
    %v588 = vmul.f32 %v501, 0.2
    %v589 = vmul.f32 %v503, 0.2
    %v590 = vmul.f32 %v554, 0.2
    %v591 = vmul.f32 %v556, 0.2
    %v592 = vmul.f32 %v505, 0.2
    %v593 = vmul.f32 %v507, 0.2
    %v594 = vmul.f32 %v558, 0.2
    %v595 = vmul.f32 %v560, 0.2
    %v596 = vmul.f32 %v511, 0.2
    %v597 = vmul.f32 %v513, 0.2
    %v598 = vmul.f32 %v564, 0.2
    %v599 = vmul.f32 %v566, 0.2
    %v600 = vmul.f32 %v515, 0.2
    %v601 = vmul.f32 %v517, 0.2
    %v602 = vmul.f32 %v568, 0.2
    %v603 = vmul.f32 %v570, 0.2
    %v604 = vsel %vm572, %v501, %v588
    %v605 = vsel %vm573, %v503, %v589
    %v606 = vsel %vm574, %v554, %v590
    %v607 = vsel %vm575, %v556, %v591
    %v608 = vsel %vm576, %v505, %v592
    %v609 = vsel %vm577, %v507, %v593
    %v610 = vsel %vm578, %v558, %v594
    %v611 = vsel %vm579, %v560, %v595
    %v612 = vsel %vm580, %v511, %v596
    %v613 = vsel %vm581, %v513, %v597
    %v614 = vsel %vm582, %v564, %v598
    %v615 = vsel %vm583, %v566, %v599
    %v616 = vsel %vm584, %v515, %v600
    %v617 = vsel %vm585, %v517, %v601
    %v618 = vsel %vm586, %v568, %v602
    %v619 = vsel %vm587, %v570, %v603
    %v620 = vpack.c.bf16 %v608, %v604
    %v621 = vpack.c.bf16 %v609, %v605
    %v622 = vpack.c.bf16 %v610, %v606
    %v623 = vpack.c.bf16 %v611, %v607
    %v624 = vpack.c.bf16 %v616, %v612
    %v625 = vpack.c.bf16 %v617, %v613
    %v626 = vpack.c.bf16 %v618, %v614
    %v627 = vpack.c.bf16 %v619, %v615
    %v628 = vld [vmem:[#allocation2] sm:$0xff]
    %v629 = vld [vmem:[#allocation2 + $0x8] sm:$0xff]
    %v630 = vld [vmem:[#allocation2 + $0x10] sm:$0xff]
    %v631 = vld [vmem:[#allocation2 + $0x18] sm:$0xff]
    %v632 = vld [vmem:[#allocation2 + $0x20] sm:$0xff]
    %v633 = vld [vmem:[#allocation2 + $0x28] sm:$0xff]
    %v634 = vld [vmem:[#allocation2 + $0x30] sm:$0xff]
    %v635 = vld [vmem:[#allocation2 + $0x38] sm:$0xff]
    %v636 = vld [vmem:[#allocation2 + $0x40] sm:$0xff]
    %v637 = vld [vmem:[#allocation2 + $0x48] sm:$0xff]
    %v638 = vld [vmem:[#allocation2 + $0x50] sm:$0xff]
    %v639 = vld [vmem:[#allocation2 + $0x58] sm:$0xff]
    %v640 = vld [vmem:[#allocation2 + $0x60] sm:$0xff]
    %v641 = vld [vmem:[#allocation2 + $0x68] sm:$0xff]
    %v642 = vld [vmem:[#allocation2 + $0x70] sm:$0xff]
    %v643 = vld [vmem:[#allocation2 + $0x78] sm:$0xff]
    %v644 = vld [vmem:[#allocation2 + $0x80] sm:$0xff]
    %v645 = vld [vmem:[#allocation2 + $0x88] sm:$0xff]
    %v646 = vld [vmem:[#allocation2 + $0x90] sm:$0xff]
    %v647 = vld [vmem:[#allocation2 + $0x98] sm:$0xff]
    %v648 = vld [vmem:[#allocation2 + $0xa0] sm:$0xff]
    %v649 = vld [vmem:[#allocation2 + $0xa8] sm:$0xff]
    %v650 = vld [vmem:[#allocation2 + $0xb0] sm:$0xff]
    %v651 = vld [vmem:[#allocation2 + $0xb8] sm:$0xff]
    %v652 = vld [vmem:[#allocation2 + $0xc0] sm:$0xff]
    %v653 = vld [vmem:[#allocation2 + $0xc8] sm:$0xff]
    %v654 = vld [vmem:[#allocation2 + $0xd0] sm:$0xff]
    %v655 = vld [vmem:[#allocation2 + $0xd8] sm:$0xff]
    %v656 = vld [vmem:[#allocation2 + $0xe0] sm:$0xff]
    %v657 = vld [vmem:[#allocation2 + $0xe8] sm:$0xff]
    %v658 = vld [vmem:[#allocation2 + $0xf0] sm:$0xff]
    %v659 = vld [vmem:[#allocation2 + $0xf8] sm:$0xff]
    %v660 = vld [vmem:[#allocation2 + $0x100] sm:$0xff]
    %v661 = vld [vmem:[#allocation2 + $0x108] sm:$0xff]
    %v662 = vld [vmem:[#allocation2 + $0x110] sm:$0xff]
    %v663 = vld [vmem:[#allocation2 + $0x118] sm:$0xff]
    %v664 = vld [vmem:[#allocation2 + $0x120] sm:$0xff]
    %v665 = vld [vmem:[#allocation2 + $0x128] sm:$0xff]
    %v666 = vld [vmem:[#allocation2 + $0x130] sm:$0xff]
    %v667 = vld [vmem:[#allocation2 + $0x138] sm:$0xff]
    %v668 = vld [vmem:[#allocation2 + $0x140] sm:$0xff]
    %v669 = vld [vmem:[#allocation2 + $0x148] sm:$0xff]
    %v670 = vld [vmem:[#allocation2 + $0x150] sm:$0xff]
    %v671 = vld [vmem:[#allocation2 + $0x158] sm:$0xff]
    %v672 = vld [vmem:[#allocation2 + $0x160] sm:$0xff]
    %v673 = vld [vmem:[#allocation2 + $0x168] sm:$0xff]
    %v674 = vld [vmem:[#allocation2 + $0x170] sm:$0xff]
    %v675 = vld [vmem:[#allocation2 + $0x178] sm:$0xff]
    %v676 = vld [vmem:[#allocation2 + $0x180] sm:$0xff]
    %v677 = vld [vmem:[#allocation2 + $0x188] sm:$0xff]
    %v678 = vld [vmem:[#allocation2 + $0x190] sm:$0xff]
    %v679 = vld [vmem:[#allocation2 + $0x198] sm:$0xff]
    %v680 = vld [vmem:[#allocation2 + $0x1a0] sm:$0xff]
    %v681 = vld [vmem:[#allocation2 + $0x1a8] sm:$0xff]
    %v682 = vld [vmem:[#allocation2 + $0x1b0] sm:$0xff]
    %v683 = vld [vmem:[#allocation2 + $0x1b8] sm:$0xff]
    %v684 = vld [vmem:[#allocation2 + $0x1c0] sm:$0xff]
    %v685 = vld [vmem:[#allocation2 + $0x1c8] sm:$0xff]
    %v686 = vld [vmem:[#allocation2 + $0x1d0] sm:$0xff]
    %v687 = vld [vmem:[#allocation2 + $0x1d8] sm:$0xff]
    %v688 = vld [vmem:[#allocation2 + $0x1e0] sm:$0xff]
    %v689 = vld [vmem:[#allocation2 + $0x1e8] sm:$0xff]
    %v690 = vld [vmem:[#allocation2 + $0x1f0] sm:$0xff]
    %v691 = vld [vmem:[#allocation2 + $0x1f8] sm:$0xff]
    %v692 = vld [vmem:[#allocation2 + $0x200] sm:$0xff]
    %v693 = vld [vmem:[#allocation2 + $0x208] sm:$0xff]
    %v694 = vld [vmem:[#allocation2 + $0x210] sm:$0xff]
    %v695 = vld [vmem:[#allocation2 + $0x218] sm:$0xff]
    %v696 = vld [vmem:[#allocation2 + $0x220] sm:$0xff]
    %v697 = vld [vmem:[#allocation2 + $0x228] sm:$0xff]
    %v698 = vld [vmem:[#allocation2 + $0x230] sm:$0xff]
    %v699 = vld [vmem:[#allocation2 + $0x238] sm:$0xff]
    %v700 = vld [vmem:[#allocation2 + $0x240] sm:$0xff]
    %v701 = vld [vmem:[#allocation2 + $0x248] sm:$0xff]
    %v702 = vld [vmem:[#allocation2 + $0x250] sm:$0xff]
    %v703 = vld [vmem:[#allocation2 + $0x258] sm:$0xff]
    %v704 = vld [vmem:[#allocation2 + $0x260] sm:$0xff]
    %v705 = vld [vmem:[#allocation2 + $0x268] sm:$0xff]
    %v706 = vld [vmem:[#allocation2 + $0x270] sm:$0xff]
    %v707 = vld [vmem:[#allocation2 + $0x278] sm:$0xff]
    %v708 = vld [vmem:[#allocation2 + $0x280] sm:$0xff]
    %v709 = vld [vmem:[#allocation2 + $0x288] sm:$0xff]
    %v710 = vld [vmem:[#allocation2 + $0x290] sm:$0xff]
    %v711 = vld [vmem:[#allocation2 + $0x298] sm:$0xff]
    %v712 = vld [vmem:[#allocation2 + $0x2a0] sm:$0xff]
    %v713 = vld [vmem:[#allocation2 + $0x2a8] sm:$0xff]
    %v714 = vld [vmem:[#allocation2 + $0x2b0] sm:$0xff]
    %v715 = vld [vmem:[#allocation2 + $0x2b8] sm:$0xff]
    %v716 = vld [vmem:[#allocation2 + $0x2c0] sm:$0xff]
    %v717 = vld [vmem:[#allocation2 + $0x2c8] sm:$0xff]
    %v718 = vld [vmem:[#allocation2 + $0x2d0] sm:$0xff]
    %v719 = vld [vmem:[#allocation2 + $0x2d8] sm:$0xff]
    %v720 = vld [vmem:[#allocation2 + $0x2e0] sm:$0xff]
    %v721 = vld [vmem:[#allocation2 + $0x2e8] sm:$0xff]
    %v722 = vld [vmem:[#allocation2 + $0x2f0] sm:$0xff]
    %v723 = vld [vmem:[#allocation2 + $0x2f8] sm:$0xff]
    %v724 = vld [vmem:[#allocation2 + $0x300] sm:$0xff]
    %v725 = vld [vmem:[#allocation2 + $0x308] sm:$0xff]
    %v726 = vld [vmem:[#allocation2 + $0x310] sm:$0xff]
    %v727 = vld [vmem:[#allocation2 + $0x318] sm:$0xff]
    %v728 = vld [vmem:[#allocation2 + $0x320] sm:$0xff]
    %v729 = vld [vmem:[#allocation2 + $0x328] sm:$0xff]
    %v730 = vld [vmem:[#allocation2 + $0x330] sm:$0xff]
    %v731 = vld [vmem:[#allocation2 + $0x338] sm:$0xff]
    %v732 = vld [vmem:[#allocation2 + $0x340] sm:$0xff]
    %v733 = vld [vmem:[#allocation2 + $0x348] sm:$0xff]
    %v734 = vld [vmem:[#allocation2 + $0x350] sm:$0xff]
    %v735 = vld [vmem:[#allocation2 + $0x358] sm:$0xff]
    %v736 = vld [vmem:[#allocation2 + $0x360] sm:$0xff]
    %v737 = vld [vmem:[#allocation2 + $0x368] sm:$0xff]
    %v738 = vld [vmem:[#allocation2 + $0x370] sm:$0xff]
    %v739 = vld [vmem:[#allocation2 + $0x378] sm:$0xff]
    %v740 = vld [vmem:[#allocation2 + $0x380] sm:$0xff]
    %v741 = vld [vmem:[#allocation2 + $0x388] sm:$0xff]
    %v742 = vld [vmem:[#allocation2 + $0x390] sm:$0xff]
    %v743 = vld [vmem:[#allocation2 + $0x398] sm:$0xff]
    %v744 = vld [vmem:[#allocation2 + $0x3a0] sm:$0xff]
    %v745 = vld [vmem:[#allocation2 + $0x3a8] sm:$0xff]
    %v746 = vld [vmem:[#allocation2 + $0x3b0] sm:$0xff]
    %v747 = vld [vmem:[#allocation2 + $0x3b8] sm:$0xff]
    %v748 = vld [vmem:[#allocation2 + $0x3c0] sm:$0xff]
    %v749 = vld [vmem:[#allocation2 + $0x3c8] sm:$0xff]
    %v750 = vld [vmem:[#allocation2 + $0x3d0] sm:$0xff]
    %v751 = vld [vmem:[#allocation2 + $0x3d8] sm:$0xff]
    %v752 = vld [vmem:[#allocation2 + $0x3e0] sm:$0xff]
    %v753 = vld [vmem:[#allocation2 + $0x3e8] sm:$0xff]
    %v754 = vld [vmem:[#allocation2 + $0x3f0] sm:$0xff]
    %v755 = vld [vmem:[#allocation2 + $0x3f8] sm:$0xff]
    %v884 = vunpack.c.l.b16 %v628
    %v885 = vunpack.c.h.b16 %v628
    %v886 = vunpack.c.l.b16 %v629
    %v887 = vunpack.c.h.b16 %v629
    %v888 = vunpack.c.l.b16 %v630
    %v889 = vunpack.c.h.b16 %v630
    %v890 = vunpack.c.l.b16 %v631
    %v891 = vunpack.c.h.b16 %v631
    %v892 = vunpack.c.l.b16 %v632
    %v893 = vunpack.c.h.b16 %v632
    %v894 = vunpack.c.l.b16 %v633
    %v895 = vunpack.c.h.b16 %v633
    %v896 = vunpack.c.l.b16 %v634
    %v897 = vunpack.c.h.b16 %v634
    %v898 = vunpack.c.l.b16 %v635
    %v899 = vunpack.c.h.b16 %v635
    %v900 = vunpack.c.l.b16 %v636
    %v901 = vunpack.c.h.b16 %v636
    %v902 = vunpack.c.l.b16 %v637
    %v903 = vunpack.c.h.b16 %v637
    %v904 = vunpack.c.l.b16 %v638
    %v905 = vunpack.c.h.b16 %v638
    %v906 = vunpack.c.l.b16 %v639
    %v907 = vunpack.c.h.b16 %v639
    %v908 = vunpack.c.l.b16 %v640
    %v909 = vunpack.c.h.b16 %v640
    %v910 = vunpack.c.l.b16 %v641
    %v911 = vunpack.c.h.b16 %v641
    %v912 = vunpack.c.l.b16 %v642
    %v913 = vunpack.c.h.b16 %v642
    %v914 = vunpack.c.l.b16 %v643
    %v915 = vunpack.c.h.b16 %v643
    %v916 = vunpack.c.l.b16 %v644
    %v917 = vunpack.c.h.b16 %v644
    %v918 = vunpack.c.l.b16 %v645
    %v919 = vunpack.c.h.b16 %v645
    %v920 = vunpack.c.l.b16 %v646
    %v921 = vunpack.c.h.b16 %v646
    %v922 = vunpack.c.l.b16 %v647
    %v923 = vunpack.c.h.b16 %v647
    %v924 = vunpack.c.l.b16 %v648
    %v925 = vunpack.c.h.b16 %v648
    %v926 = vunpack.c.l.b16 %v649
    %v927 = vunpack.c.h.b16 %v649
    %v928 = vunpack.c.l.b16 %v650
    %v929 = vunpack.c.h.b16 %v650
    %v930 = vunpack.c.l.b16 %v651
    %v931 = vunpack.c.h.b16 %v651
    %v932 = vunpack.c.l.b16 %v652
    %v933 = vunpack.c.h.b16 %v652
    %v934 = vunpack.c.l.b16 %v653
    %v935 = vunpack.c.h.b16 %v653
    %v936 = vunpack.c.l.b16 %v654
    %v937 = vunpack.c.h.b16 %v654
    %v938 = vunpack.c.l.b16 %v655
    %v939 = vunpack.c.h.b16 %v655
    %v940 = vunpack.c.l.b16 %v656
    %v941 = vunpack.c.h.b16 %v656
    %v942 = vunpack.c.l.b16 %v657
    %v943 = vunpack.c.h.b16 %v657
    %v944 = vunpack.c.l.b16 %v658
    %v945 = vunpack.c.h.b16 %v658
    %v946 = vunpack.c.l.b16 %v659
    %v947 = vunpack.c.h.b16 %v659
    %v948 = vunpack.c.l.b16 %v660
    %v949 = vunpack.c.h.b16 %v660
    %v950 = vunpack.c.l.b16 %v661
    %v951 = vunpack.c.h.b16 %v661
    %v952 = vunpack.c.l.b16 %v662
    %v953 = vunpack.c.h.b16 %v662
    %v954 = vunpack.c.l.b16 %v663
    %v955 = vunpack.c.h.b16 %v663
    %v956 = vunpack.c.l.b16 %v664
    %v957 = vunpack.c.h.b16 %v664
    %v958 = vunpack.c.l.b16 %v665
    %v959 = vunpack.c.h.b16 %v665
    %v960 = vunpack.c.l.b16 %v666
    %v961 = vunpack.c.h.b16 %v666
    %v962 = vunpack.c.l.b16 %v667
    %v963 = vunpack.c.h.b16 %v667
    %v964 = vunpack.c.l.b16 %v668
    %v965 = vunpack.c.h.b16 %v668
    %v966 = vunpack.c.l.b16 %v669
    %v967 = vunpack.c.h.b16 %v669
    %v968 = vunpack.c.l.b16 %v670
    %v969 = vunpack.c.h.b16 %v670
    %v970 = vunpack.c.l.b16 %v671
    %v971 = vunpack.c.h.b16 %v671
    %v972 = vunpack.c.l.b16 %v672
    %v973 = vunpack.c.h.b16 %v672
    %v974 = vunpack.c.l.b16 %v673
    %v975 = vunpack.c.h.b16 %v673
    %v976 = vunpack.c.l.b16 %v674
    %v977 = vunpack.c.h.b16 %v674
    %v978 = vunpack.c.l.b16 %v675
    %v979 = vunpack.c.h.b16 %v675
    %v980 = vunpack.c.l.b16 %v676
    %v981 = vunpack.c.h.b16 %v676
    %v982 = vunpack.c.l.b16 %v677
    %v983 = vunpack.c.h.b16 %v677
    %v984 = vunpack.c.l.b16 %v678
    %v985 = vunpack.c.h.b16 %v678
    %v986 = vunpack.c.l.b16 %v679
    %v987 = vunpack.c.h.b16 %v679
    %v988 = vunpack.c.l.b16 %v680
    %v989 = vunpack.c.h.b16 %v680
    %v990 = vunpack.c.l.b16 %v681
    %v991 = vunpack.c.h.b16 %v681
    %v992 = vunpack.c.l.b16 %v682
    %v993 = vunpack.c.h.b16 %v682
    %v994 = vunpack.c.l.b16 %v683
    %v995 = vunpack.c.h.b16 %v683
    %v996 = vunpack.c.l.b16 %v684
    %v997 = vunpack.c.h.b16 %v684
    %v998 = vunpack.c.l.b16 %v685
    %v999 = vunpack.c.h.b16 %v685
    %v1000 = vunpack.c.l.b16 %v686
    %v1001 = vunpack.c.h.b16 %v686
    %v1002 = vunpack.c.l.b16 %v687
    %v1003 = vunpack.c.h.b16 %v687
    %v1004 = vunpack.c.l.b16 %v688
    %v1005 = vunpack.c.h.b16 %v688
    %v1006 = vunpack.c.l.b16 %v689
    %v1007 = vunpack.c.h.b16 %v689
    %v1008 = vunpack.c.l.b16 %v690
    %v1009 = vunpack.c.h.b16 %v690
    %v1010 = vunpack.c.l.b16 %v691
    %v1011 = vunpack.c.h.b16 %v691
    %v1012 = vunpack.c.l.b16 %v692
    %v1013 = vunpack.c.h.b16 %v692
    %v1014 = vunpack.c.l.b16 %v693
    %v1015 = vunpack.c.h.b16 %v693
    %v1016 = vunpack.c.l.b16 %v694
    %v1017 = vunpack.c.h.b16 %v694
    %v1018 = vunpack.c.l.b16 %v695
    %v1019 = vunpack.c.h.b16 %v695
    %v1020 = vunpack.c.l.b16 %v696
    %v1021 = vunpack.c.h.b16 %v696
    %v1022 = vunpack.c.l.b16 %v697
    %v1023 = vunpack.c.h.b16 %v697
    %v1024 = vunpack.c.l.b16 %v698
    %v1025 = vunpack.c.h.b16 %v698
    %v1026 = vunpack.c.l.b16 %v699
    %v1027 = vunpack.c.h.b16 %v699
    %v1028 = vunpack.c.l.b16 %v700
    %v1029 = vunpack.c.h.b16 %v700
    %v1030 = vunpack.c.l.b16 %v701
    %v1031 = vunpack.c.h.b16 %v701
    %v1032 = vunpack.c.l.b16 %v702
    %v1033 = vunpack.c.h.b16 %v702
    %v1034 = vunpack.c.l.b16 %v703
    %v1035 = vunpack.c.h.b16 %v703
    %v1036 = vunpack.c.l.b16 %v704
    %v1037 = vunpack.c.h.b16 %v704
    %v1038 = vunpack.c.l.b16 %v705
    %v1039 = vunpack.c.h.b16 %v705
    %v1040 = vunpack.c.l.b16 %v706
    %v1041 = vunpack.c.h.b16 %v706
    %v1042 = vunpack.c.l.b16 %v707
    %v1043 = vunpack.c.h.b16 %v707
    %v1044 = vunpack.c.l.b16 %v708
    %v1045 = vunpack.c.h.b16 %v708
    %v1046 = vunpack.c.l.b16 %v709
    %v1047 = vunpack.c.h.b16 %v709
    %v1048 = vunpack.c.l.b16 %v710
    %v1049 = vunpack.c.h.b16 %v710
    %v1050 = vunpack.c.l.b16 %v711
    %v1051 = vunpack.c.h.b16 %v711
    %v1052 = vunpack.c.l.b16 %v712
    %v1053 = vunpack.c.h.b16 %v712
    %v1054 = vunpack.c.l.b16 %v713
    %v1055 = vunpack.c.h.b16 %v713
    %v1056 = vunpack.c.l.b16 %v714
    %v1057 = vunpack.c.h.b16 %v714
    %v1058 = vunpack.c.l.b16 %v715
    %v1059 = vunpack.c.h.b16 %v715
    %v1060 = vunpack.c.l.b16 %v716
    %v1061 = vunpack.c.h.b16 %v716
    %v1062 = vunpack.c.l.b16 %v717
    %v1063 = vunpack.c.h.b16 %v717
    %v1064 = vunpack.c.l.b16 %v718
    %v1065 = vunpack.c.h.b16 %v718
    %v1066 = vunpack.c.l.b16 %v719
    %v1067 = vunpack.c.h.b16 %v719
    %v1068 = vunpack.c.l.b16 %v720
    %v1069 = vunpack.c.h.b16 %v720
    %v1070 = vunpack.c.l.b16 %v721
    %v1071 = vunpack.c.h.b16 %v721
    %v1072 = vunpack.c.l.b16 %v722
    %v1073 = vunpack.c.h.b16 %v722
    %v1074 = vunpack.c.l.b16 %v723
    %v1075 = vunpack.c.h.b16 %v723
    %v1076 = vunpack.c.l.b16 %v724
    %v1077 = vunpack.c.h.b16 %v724
    %v1078 = vunpack.c.l.b16 %v725
    %v1079 = vunpack.c.h.b16 %v725
    %v1080 = vunpack.c.l.b16 %v726
    %v1081 = vunpack.c.h.b16 %v726
    %v1082 = vunpack.c.l.b16 %v727
    %v1083 = vunpack.c.h.b16 %v727
    %v1084 = vunpack.c.l.b16 %v728
    %v1085 = vunpack.c.h.b16 %v728
    %v1086 = vunpack.c.l.b16 %v729
    %v1087 = vunpack.c.h.b16 %v729
    %v1088 = vunpack.c.l.b16 %v730
    %v1089 = vunpack.c.h.b16 %v730
    %v1090 = vunpack.c.l.b16 %v731
    %v1091 = vunpack.c.h.b16 %v731
    %v1092 = vunpack.c.l.b16 %v732
    %v1093 = vunpack.c.h.b16 %v732
    %v1094 = vunpack.c.l.b16 %v733
    %v1095 = vunpack.c.h.b16 %v733
    %v1096 = vunpack.c.l.b16 %v734
    %v1097 = vunpack.c.h.b16 %v734
    %v1098 = vunpack.c.l.b16 %v735
    %v1099 = vunpack.c.h.b16 %v735
    %v1100 = vunpack.c.l.b16 %v736
    %v1101 = vunpack.c.h.b16 %v736
    %v1102 = vunpack.c.l.b16 %v737
    %v1103 = vunpack.c.h.b16 %v737
    %v1104 = vunpack.c.l.b16 %v738
    %v1105 = vunpack.c.h.b16 %v738
    %v1106 = vunpack.c.l.b16 %v739
    %v1107 = vunpack.c.h.b16 %v739
    %v1108 = vunpack.c.l.b16 %v740
    %v1109 = vunpack.c.h.b16 %v740
    %v1110 = vunpack.c.l.b16 %v741
    %v1111 = vunpack.c.h.b16 %v741
    %v1112 = vunpack.c.l.b16 %v742
    %v1113 = vunpack.c.h.b16 %v742
    %v1114 = vunpack.c.l.b16 %v743
    %v1115 = vunpack.c.h.b16 %v743
    %v1116 = vunpack.c.l.b16 %v744
    %v1117 = vunpack.c.h.b16 %v744
    %v1118 = vunpack.c.l.b16 %v745
    %v1119 = vunpack.c.h.b16 %v745
    %v1120 = vunpack.c.l.b16 %v746
    %v1121 = vunpack.c.h.b16 %v746
    %v1122 = vunpack.c.l.b16 %v747
    %v1123 = vunpack.c.h.b16 %v747
    %v1124 = vunpack.c.l.b16 %v748
    %v1125 = vunpack.c.h.b16 %v748
    %v1126 = vunpack.c.l.b16 %v749
    %v1127 = vunpack.c.h.b16 %v749
    %v1128 = vunpack.c.l.b16 %v750
    %v1129 = vunpack.c.h.b16 %v750
    %v1130 = vunpack.c.l.b16 %v751
    %v1131 = vunpack.c.h.b16 %v751
    %v1132 = vunpack.c.l.b16 %v752
    %v1133 = vunpack.c.h.b16 %v752
    %v1134 = vunpack.c.l.b16 %v753
    %v1135 = vunpack.c.h.b16 %v753
    %v1136 = vunpack.c.l.b16 %v754
    %v1137 = vunpack.c.h.b16 %v754
    %v1138 = vunpack.c.l.b16 %v755
    %v1139 = vunpack.c.h.b16 %v755
    %v1140 = vpack.c.b16 %v888, %v884
    %v1141 = vpack.c.b16 %v889, %v885
    %v1142 = vpack.c.b16 %v890, %v886
    %v1143 = vpack.c.b16 %v891, %v887
    %v1144 = vpack.c.b16 %v896, %v892
    %v1145 = vpack.c.b16 %v897, %v893
    %v1146 = vpack.c.b16 %v898, %v894
    %v1147 = vpack.c.b16 %v899, %v895
    %v1148 = vpack.c.b16 %v904, %v900
    %v1149 = vpack.c.b16 %v905, %v901
    %v1150 = vpack.c.b16 %v906, %v902
    %v1151 = vpack.c.b16 %v907, %v903
    %v1152 = vpack.c.b16 %v912, %v908
    %v1153 = vpack.c.b16 %v913, %v909
    %v1154 = vpack.c.b16 %v914, %v910
    %v1155 = vpack.c.b16 %v915, %v911
    %v1156 = vpack.c.b16 %v920, %v916
    %v1157 = vpack.c.b16 %v921, %v917
    %v1158 = vpack.c.b16 %v922, %v918
    %v1159 = vpack.c.b16 %v923, %v919
    %v1160 = vpack.c.b16 %v928, %v924
    %v1161 = vpack.c.b16 %v929, %v925
    %v1162 = vpack.c.b16 %v930, %v926
    %v1163 = vpack.c.b16 %v931, %v927
    %v1164 = vpack.c.b16 %v936, %v932
    %v1165 = vpack.c.b16 %v937, %v933
    %v1166 = vpack.c.b16 %v938, %v934
    %v1167 = vpack.c.b16 %v939, %v935
    %v1168 = vpack.c.b16 %v944, %v940
    %v1169 = vpack.c.b16 %v945, %v941
    %v1170 = vpack.c.b16 %v946, %v942
    %v1171 = vpack.c.b16 %v947, %v943
    %v1172 = vpack.c.b16 %v952, %v948
    %v1173 = vpack.c.b16 %v953, %v949
    %v1174 = vpack.c.b16 %v954, %v950
    %v1175 = vpack.c.b16 %v955, %v951
    %v1176 = vpack.c.b16 %v960, %v956
    %v1177 = vpack.c.b16 %v961, %v957
    %v1178 = vpack.c.b16 %v962, %v958
    %v1179 = vpack.c.b16 %v963, %v959
    %v1180 = vpack.c.b16 %v968, %v964
    %v1181 = vpack.c.b16 %v969, %v965
    %v1182 = vpack.c.b16 %v970, %v966
    %v1183 = vpack.c.b16 %v971, %v967
    %v1184 = vpack.c.b16 %v976, %v972
    %v1185 = vpack.c.b16 %v977, %v973
    %v1186 = vpack.c.b16 %v978, %v974
    %v1187 = vpack.c.b16 %v979, %v975
    %v1188 = vpack.c.b16 %v984, %v980
    %v1189 = vpack.c.b16 %v985, %v981
    %v1190 = vpack.c.b16 %v986, %v982
    %v1191 = vpack.c.b16 %v987, %v983
    %v1192 = vpack.c.b16 %v992, %v988
    %v1193 = vpack.c.b16 %v993, %v989
    %v1194 = vpack.c.b16 %v994, %v990
    %v1195 = vpack.c.b16 %v995, %v991
    %v1196 = vpack.c.b16 %v1000, %v996
    %v1197 = vpack.c.b16 %v1001, %v997
    %v1198 = vpack.c.b16 %v1002, %v998
    %v1199 = vpack.c.b16 %v1003, %v999
    %v1200 = vpack.c.b16 %v1008, %v1004
    %v1201 = vpack.c.b16 %v1009, %v1005
    %v1202 = vpack.c.b16 %v1010, %v1006
    %v1203 = vpack.c.b16 %v1011, %v1007
    %v1204 = vpack.c.b16 %v1016, %v1012
    %v1205 = vpack.c.b16 %v1017, %v1013
    %v1206 = vpack.c.b16 %v1018, %v1014
    %v1207 = vpack.c.b16 %v1019, %v1015
    %v1208 = vpack.c.b16 %v1024, %v1020
    %v1209 = vpack.c.b16 %v1025, %v1021
    %v1210 = vpack.c.b16 %v1026, %v1022
    %v1211 = vpack.c.b16 %v1027, %v1023
    %v1212 = vpack.c.b16 %v1032, %v1028
    %v1213 = vpack.c.b16 %v1033, %v1029
    %v1214 = vpack.c.b16 %v1034, %v1030
    %v1215 = vpack.c.b16 %v1035, %v1031
    %v1216 = vpack.c.b16 %v1040, %v1036
    %v1217 = vpack.c.b16 %v1041, %v1037
    %v1218 = vpack.c.b16 %v1042, %v1038
    %v1219 = vpack.c.b16 %v1043, %v1039
    %v1220 = vpack.c.b16 %v1048, %v1044
    %v1221 = vpack.c.b16 %v1049, %v1045
    %v1222 = vpack.c.b16 %v1050, %v1046
    %v1223 = vpack.c.b16 %v1051, %v1047
    %v1224 = vpack.c.b16 %v1056, %v1052
    %v1225 = vpack.c.b16 %v1057, %v1053
    %v1226 = vpack.c.b16 %v1058, %v1054
    %v1227 = vpack.c.b16 %v1059, %v1055
    %v1228 = vpack.c.b16 %v1064, %v1060
    %v1229 = vpack.c.b16 %v1065, %v1061
    %v1230 = vpack.c.b16 %v1066, %v1062
    %v1231 = vpack.c.b16 %v1067, %v1063
    %v1232 = vpack.c.b16 %v1072, %v1068
    %v1233 = vpack.c.b16 %v1073, %v1069
    %v1234 = vpack.c.b16 %v1074, %v1070
    %v1235 = vpack.c.b16 %v1075, %v1071
    %v1236 = vpack.c.b16 %v1080, %v1076
    %v1237 = vpack.c.b16 %v1081, %v1077
    %v1238 = vpack.c.b16 %v1082, %v1078
    %v1239 = vpack.c.b16 %v1083, %v1079
    %v1240 = vpack.c.b16 %v1088, %v1084
    %v1241 = vpack.c.b16 %v1089, %v1085
    %v1242 = vpack.c.b16 %v1090, %v1086
    %v1243 = vpack.c.b16 %v1091, %v1087
    %v1244 = vpack.c.b16 %v1096, %v1092
    %v1245 = vpack.c.b16 %v1097, %v1093
    %v1246 = vpack.c.b16 %v1098, %v1094
    %v1247 = vpack.c.b16 %v1099, %v1095
    %v1248 = vpack.c.b16 %v1104, %v1100
    %v1249 = vpack.c.b16 %v1105, %v1101
    %v1250 = vpack.c.b16 %v1106, %v1102
    %v1251 = vpack.c.b16 %v1107, %v1103
    %v1252 = vpack.c.b16 %v1112, %v1108
    %v1253 = vpack.c.b16 %v1113, %v1109
    %v1254 = vpack.c.b16 %v1114, %v1110
    %v1255 = vpack.c.b16 %v1115, %v1111
    %v1256 = vpack.c.b16 %v1120, %v1116
    %v1257 = vpack.c.b16 %v1121, %v1117
    %v1258 = vpack.c.b16 %v1122, %v1118
    %v1259 = vpack.c.b16 %v1123, %v1119
    %v1260 = vpack.c.b16 %v1128, %v1124
    %v1261 = vpack.c.b16 %v1129, %v1125
    %v1262 = vpack.c.b16 %v1130, %v1126
    %v1263 = vpack.c.b16 %v1131, %v1127
    %v1264 = vpack.c.b16 %v1136, %v1132
    %v1265 = vpack.c.b16 %v1137, %v1133
    %v1266 = vpack.c.b16 %v1138, %v1134
    %v1267 = vpack.c.b16 %v1139, %v1135
    %1396 = vmatprep.subr.bf16.mxu0 %v1141
    %1397 = vmatpush1.bf16.msra.mxu0 %v1140
    %1398 = vmatprep.subr.bf16.mxu0 %v1145
    %1399 = vmatpush1.bf16.msra.mxu0 %v1144
    %1400 = vmatprep.subr.bf16.mxu0 %v1149
    %1401 = vmatpush1.bf16.msra.mxu0 %v1148
    %1402 = vmatprep.subr.bf16.mxu0 %v1153
    %1403 = vmatpush1.bf16.msra.mxu0 %v1152
    %1404 = vmatprep.subr.bf16.mxu0 %v1157
    %1405 = vmatpush1.bf16.msra.mxu0 %v1156
    %1406 = vmatprep.subr.bf16.mxu0 %v1161
    %1407 = vmatpush1.bf16.msra.mxu0 %v1160
    %1408 = vmatprep.subr.bf16.mxu0 %v1165
    %1409 = vmatpush1.bf16.msra.mxu0 %v1164
    %1410 = vmatprep.subr.bf16.mxu0 %v1169
    %1411 = vmatpush1.bf16.msra.mxu0 %v1168
    %1412 = vmatprep.subr.bf16.mxu0 %v1173
    %1413 = vmatpush1.bf16.msra.mxu0 %v1172
    %1414 = vmatprep.subr.bf16.mxu0 %v1177
    %1415 = vmatpush1.bf16.msra.mxu0 %v1176
    %1416 = vmatprep.subr.bf16.mxu0 %v1181
    %1417 = vmatpush1.bf16.msra.mxu0 %v1180
    %1418 = vmatprep.subr.bf16.mxu0 %v1185
    %1419 = vmatpush1.bf16.msra.mxu0 %v1184
    %1420 = vmatprep.subr.bf16.mxu0 %v1189
    %1421 = vmatpush1.bf16.msra.mxu0 %v1188
    %1422 = vmatprep.subr.bf16.mxu0 %v1193
    %1423 = vmatpush1.bf16.msra.mxu0 %v1192
    %1424 = vmatprep.subr.bf16.mxu0 %v1197
    %1425 = vmatpush1.bf16.msra.mxu0 %v1196
    %1426 = vmatprep.subr.bf16.mxu0 %v1201
    %1427 = vmatpush1.bf16.msra.mxu0 %v1200
    %1428 = vmatprep.mubr.bf16.mxu0 %v621
    %1429 = vmatmul.mubr.bf16.gmra.mrb[0].mxu0 %v620
    %v1430 = vpop.f32.mrb[0].mxu0
    %v1431 = vadd.f32 0.0, %v1430
    %v1432 = vpop.f32.mrb[0].mxu0
    %v1433 = vadd.f32 0.0, %v1432
    %v1434 = vpop.f32.mrb[0].mxu0
    %v1435 = vadd.f32 0.0, %v1434
    %v1436 = vpop.f32.mrb[0].mxu0
    %v1437 = vadd.f32 0.0, %v1436
    %1438 = vmatprep.mubr.bf16.mxu0 %v625
    %1439 = vmatmul.mubr.bf16.gmra.mrb[0].mxu0 %v624
    %v1440 = vpop.f32.mrb[0].mxu0
    %v1441 = vadd.f32 0.0, %v1440
    %v1442 = vpop.f32.mrb[0].mxu0
    %v1443 = vadd.f32 0.0, %v1442
    %v1444 = vpop.f32.mrb[0].mxu0
    %v1445 = vadd.f32 0.0, %v1444
    %v1446 = vpop.f32.mrb[0].mxu0
    %v1447 = vadd.f32 0.0, %v1446
    %1448 = vdwg.mxu0
    %1449 = vmatprep.subr.bf16.mxu0 %v1205
    %1450 = vmatpush1.bf16.msra.mxu0 %v1204
    %1451 = vmatprep.subr.bf16.mxu0 %v1209
    %1452 = vmatpush1.bf16.msra.mxu0 %v1208
    %1453 = vmatprep.subr.bf16.mxu0 %v1213
    %1454 = vmatpush1.bf16.msra.mxu0 %v1212
    %1455 = vmatprep.subr.bf16.mxu0 %v1217
    %1456 = vmatpush1.bf16.msra.mxu0 %v1216
    %1457 = vmatprep.subr.bf16.mxu0 %v1221
    %1458 = vmatpush1.bf16.msra.mxu0 %v1220
    %1459 = vmatprep.subr.bf16.mxu0 %v1225
    %1460 = vmatpush1.bf16.msra.mxu0 %v1224
    %1461 = vmatprep.subr.bf16.mxu0 %v1229
    %1462 = vmatpush1.bf16.msra.mxu0 %v1228
    %1463 = vmatprep.subr.bf16.mxu0 %v1233
    %1464 = vmatpush1.bf16.msra.mxu0 %v1232
    %1465 = vmatprep.subr.bf16.mxu0 %v1237
    %1466 = vmatpush1.bf16.msra.mxu0 %v1236
    %1467 = vmatprep.subr.bf16.mxu0 %v1241
    %1468 = vmatpush1.bf16.msra.mxu0 %v1240
    %1469 = vmatprep.subr.bf16.mxu0 %v1245
    %1470 = vmatpush1.bf16.msra.mxu0 %v1244
    %1471 = vmatprep.subr.bf16.mxu0 %v1249
    %1472 = vmatpush1.bf16.msra.mxu0 %v1248
    %1473 = vmatprep.subr.bf16.mxu0 %v1253
    %1474 = vmatpush1.bf16.msra.mxu0 %v1252
    %1475 = vmatprep.subr.bf16.mxu0 %v1257
    %1476 = vmatpush1.bf16.msra.mxu0 %v1256
    %1477 = vmatprep.subr.bf16.mxu0 %v1261
    %1478 = vmatpush1.bf16.msra.mxu0 %v1260
    %1479 = vmatprep.subr.bf16.mxu0 %v1265
    %1480 = vmatpush1.bf16.msra.mxu0 %v1264
    %1481 = vmatprep.mubr.bf16.mxu0 %v623
    %1482 = vmatmul.mubr.bf16.gmra.mrb[0].mxu0 %v622
    %v1483 = vpop.f32.mrb[0].mxu0
    %v1484 = vadd.f32 %v1431, %v1483
    %v1485 = vpop.f32.mrb[0].mxu0
    %v1486 = vadd.f32 %v1433, %v1485
    %v1487 = vpop.f32.mrb[0].mxu0
    %v1488 = vadd.f32 %v1435, %v1487
    %v1489 = vpop.f32.mrb[0].mxu0
    %v1490 = vadd.f32 %v1437, %v1489
    %1491 = vmatprep.mubr.bf16.mxu0 %v627
    %1492 = vmatmul.mubr.bf16.gmra.mrb[0].mxu0 %v626
    %v1493 = vpop.f32.mrb[0].mxu0
    %v1494 = vadd.f32 %v1441, %v1493
    %v1495 = vpop.f32.mrb[0].mxu0
    %v1496 = vadd.f32 %v1443, %v1495
    %v1497 = vpop.f32.mrb[0].mxu0
    %v1498 = vadd.f32 %v1445, %v1497
    %v1499 = vpop.f32.mrb[0].mxu0
    %v1500 = vadd.f32 %v1447, %v1499
    %1501 = vdwg.mxu0
    %1502 = vmatprep.subr.bf16.mxu0 %v1143
    %1503 = vmatpush1.bf16.msra.mxu0 %v1142
    %1504 = vmatprep.subr.bf16.mxu0 %v1147
    %1505 = vmatpush1.bf16.msra.mxu0 %v1146
    %1506 = vmatprep.subr.bf16.mxu0 %v1151
    %1507 = vmatpush1.bf16.msra.mxu0 %v1150
    %1508 = vmatprep.subr.bf16.mxu0 %v1155
    %1509 = vmatpush1.bf16.msra.mxu0 %v1154
    %1510 = vmatprep.subr.bf16.mxu0 %v1159
    %1511 = vmatpush1.bf16.msra.mxu0 %v1158
    %1512 = vmatprep.subr.bf16.mxu0 %v1163
    %1513 = vmatpush1.bf16.msra.mxu0 %v1162
    %1514 = vmatprep.subr.bf16.mxu0 %v1167
    %1515 = vmatpush1.bf16.msra.mxu0 %v1166
    %1516 = vmatprep.subr.bf16.mxu0 %v1171
    %1517 = vmatpush1.bf16.msra.mxu0 %v1170
    %1518 = vmatprep.subr.bf16.mxu0 %v1175
    %1519 = vmatpush1.bf16.msra.mxu0 %v1174
    %1520 = vmatprep.subr.bf16.mxu0 %v1179
    %1521 = vmatpush1.bf16.msra.mxu0 %v1178
    %1522 = vmatprep.subr.bf16.mxu0 %v1183
    %1523 = vmatpush1.bf16.msra.mxu0 %v1182
    %1524 = vmatprep.subr.bf16.mxu0 %v1187
    %1525 = vmatpush1.bf16.msra.mxu0 %v1186
    %1526 = vmatprep.subr.bf16.mxu0 %v1191
    %1527 = vmatpush1.bf16.msra.mxu0 %v1190
    %1528 = vmatprep.subr.bf16.mxu0 %v1195
    %1529 = vmatpush1.bf16.msra.mxu0 %v1194
    %1530 = vmatprep.subr.bf16.mxu0 %v1199
    %1531 = vmatpush1.bf16.msra.mxu0 %v1198
    %1532 = vmatprep.subr.bf16.mxu0 %v1203
    %1533 = vmatpush1.bf16.msra.mxu0 %v1202
    %1534 = vmatprep.mubr.bf16.mxu0 %v621
    %1535 = vmatmul.mubr.bf16.gmra.mrb[0].mxu0 %v620
    %v1536 = vpop.f32.mrb[0].mxu0
    %v1537 = vadd.f32 0.0, %v1536
    %v1538 = vpop.f32.mrb[0].mxu0
    %v1539 = vadd.f32 0.0, %v1538
    %v1540 = vpop.f32.mrb[0].mxu0
    %v1541 = vadd.f32 0.0, %v1540
    %v1542 = vpop.f32.mrb[0].mxu0
    %v1543 = vadd.f32 0.0, %v1542
    %1544 = vmatprep.mubr.bf16.mxu0 %v625
    %1545 = vmatmul.mubr.bf16.gmra.mrb[0].mxu0 %v624
    %v1546 = vpop.f32.mrb[0].mxu0
    %v1547 = vadd.f32 0.0, %v1546
    %v1548 = vpop.f32.mrb[0].mxu0
    %v1549 = vadd.f32 0.0, %v1548
    %v1550 = vpop.f32.mrb[0].mxu0
    %v1551 = vadd.f32 0.0, %v1550
    %v1552 = vpop.f32.mrb[0].mxu0
    %v1553 = vadd.f32 0.0, %v1552
    %1554 = vdwg.mxu0
    %1555 = vmatprep.subr.bf16.mxu0 %v1207
    %1556 = vmatpush1.bf16.msra.mxu0 %v1206
    %1557 = vmatprep.subr.bf16.mxu0 %v1211
    %1558 = vmatpush1.bf16.msra.mxu0 %v1210
    %1559 = vmatprep.subr.bf16.mxu0 %v1215
    %1560 = vmatpush1.bf16.msra.mxu0 %v1214
    %1561 = vmatprep.subr.bf16.mxu0 %v1219
    %1562 = vmatpush1.bf16.msra.mxu0 %v1218
    %1563 = vmatprep.subr.bf16.mxu0 %v1223
    %1564 = vmatpush1.bf16.msra.mxu0 %v1222
    %1565 = vmatprep.subr.bf16.mxu0 %v1227
    %1566 = vmatpush1.bf16.msra.mxu0 %v1226
    %1567 = vmatprep.subr.bf16.mxu0 %v1231
    %1568 = vmatpush1.bf16.msra.mxu0 %v1230
    %1569 = vmatprep.subr.bf16.mxu0 %v1235
    %1570 = vmatpush1.bf16.msra.mxu0 %v1234
    %1571 = vmatprep.subr.bf16.mxu0 %v1239
    %1572 = vmatpush1.bf16.msra.mxu0 %v1238
    %1573 = vmatprep.subr.bf16.mxu0 %v1243
    %1574 = vmatpush1.bf16.msra.mxu0 %v1242
    %1575 = vmatprep.subr.bf16.mxu0 %v1247
    %1576 = vmatpush1.bf16.msra.mxu0 %v1246
    %1577 = vmatprep.subr.bf16.mxu0 %v1251
    %1578 = vmatpush1.bf16.msra.mxu0 %v1250
    %1579 = vmatprep.subr.bf16.mxu0 %v1255
    %1580 = vmatpush1.bf16.msra.mxu0 %v1254
    %1581 = vmatprep.subr.bf16.mxu0 %v1259
    %1582 = vmatpush1.bf16.msra.mxu0 %v1258
    %1583 = vmatprep.subr.bf16.mxu0 %v1263
    %1584 = vmatpush1.bf16.msra.mxu0 %v1262
    %1585 = vmatprep.subr.bf16.mxu0 %v1267
    %1586 = vmatpush1.bf16.msra.mxu0 %v1266
    %1587 = vmatprep.mubr.bf16.mxu0 %v623
    %1588 = vmatmul.mubr.bf16.gmra.mrb[0].mxu0 %v622
    %v1589 = vpop.f32.mrb[0].mxu0
    %v1590 = vadd.f32 %v1537, %v1589
    %v1591 = vpop.f32.mrb[0].mxu0
    %v1592 = vadd.f32 %v1539, %v1591
    %v1593 = vpop.f32.mrb[0].mxu0
    %v1594 = vadd.f32 %v1541, %v1593
    %v1595 = vpop.f32.mrb[0].mxu0
    %v1596 = vadd.f32 %v1543, %v1595
    %1597 = vmatprep.mubr.bf16.mxu0 %v627
    %1598 = vmatmul.mubr.bf16.gmra.mrb[0].mxu0 %v626
    %v1599 = vpop.f32.mrb[0].mxu0
    %v1600 = vadd.f32 %v1547, %v1599
    %v1601 = vpop.f32.mrb[0].mxu0
    %v1602 = vadd.f32 %v1549, %v1601
    %v1603 = vpop.f32.mrb[0].mxu0
    %v1604 = vadd.f32 %v1551, %v1603
    %v1605 = vpop.f32.mrb[0].mxu0
    %v1606 = vadd.f32 %v1553, %v1605
    %1607 = vdwg.mxu0
    %v1608 = vadd.f32 %v1484, %v1488
    %v1609 = vadd.f32 %v1608, %v1494
    %v1610 = vadd.f32 %v1609, %v1498
    %v1611 = vrot.slane %v1610, 4
    %v1612 = vadd.f32 %v1610, %v1611
    %v1613 = vrot.slane %v1612, 2
    %v1614 = vadd.f32 %v1612, %v1613
    %v1615 = vrot.slane %v1614, 1
    %v1616 = vadd.f32 %v1614, %v1615
    %v1617 = vadd.f32 %v1486, %v1490
    %v1618 = vadd.f32 %v1617, %v1496
    %v1619 = vadd.f32 %v1618, %v1500
    %v1620 = vrot.slane %v1619, 4
    %v1621 = vadd.f32 %v1619, %v1620
    %v1622 = vrot.slane %v1621, 2
    %v1623 = vadd.f32 %v1621, %v1622
    %v1624 = vrot.slane %v1623, 1
    %v1625 = vadd.f32 %v1623, %v1624
    %v1626 = vadd.f32 %v1590, %v1594
    %v1627 = vadd.f32 %v1626, %v1600
    %v1628 = vadd.f32 %v1627, %v1604
    %v1629 = vrot.slane %v1628, 4
    %v1630 = vadd.f32 %v1628, %v1629
    %v1631 = vrot.slane %v1630, 2
    %v1632 = vadd.f32 %v1630, %v1631
    %v1633 = vrot.slane %v1632, 1
    %v1634 = vadd.f32 %v1632, %v1633
    %v1635 = vadd.f32 %v1592, %v1596
    %v1636 = vadd.f32 %v1635, %v1602
    %v1637 = vadd.f32 %v1636, %v1606
    %v1638 = vrot.slane %v1637, 4
    %v1639 = vadd.f32 %v1637, %v1638
    %v1640 = vrot.slane %v1639, 2
    %v1641 = vadd.f32 %v1639, %v1640
    %v1642 = vrot.slane %v1641, 1
    %v1643 = vadd.f32 %v1641, %v1642
    %v1644 = vrcp.pop 32.0
    %v1645 = vmul.f32 %v1616, %v1644
    %v1646 = vmul.f32 %v1625, %v1644
    %v1647 = vmul.f32 %v1634, %v1644
    %v1648 = vmul.f32 %v1643, %v1644
    %v1649 = vsub.f32 %v1484, %v1645
    %v1650 = vsub.f32 %v1486, %v1646
    %v1651 = vsub.f32 %v1590, %v1647
    %v1652 = vsub.f32 %v1592, %v1648
    %v1653 = vsub.f32 %v1488, %v1645
    %v1654 = vsub.f32 %v1490, %v1646
    %v1655 = vsub.f32 %v1594, %v1647
    %v1656 = vsub.f32 %v1596, %v1648
    %v1657 = vsub.f32 %v1494, %v1645
    %v1658 = vsub.f32 %v1496, %v1646
    %v1659 = vsub.f32 %v1600, %v1647
    %v1660 = vsub.f32 %v1602, %v1648
    %v1661 = vsub.f32 %v1498, %v1645
    %v1662 = vsub.f32 %v1500, %v1646
    %v1663 = vsub.f32 %v1604, %v1647
    %v1664 = vsub.f32 %v1606, %v1648
    %v1665 = vmul.f32 %v1649, %v1649
    %v1666 = vmul.f32 %v1650, %v1650
    %v1667 = vmul.f32 %v1651, %v1651
    %v1668 = vmul.f32 %v1652, %v1652
    %v1669 = vmul.f32 %v1653, %v1653
    %v1670 = vmul.f32 %v1654, %v1654
    %v1671 = vmul.f32 %v1655, %v1655
    %v1672 = vmul.f32 %v1656, %v1656
    %v1673 = vmul.f32 %v1657, %v1657
    %v1674 = vmul.f32 %v1658, %v1658
    %v1675 = vmul.f32 %v1659, %v1659
    %v1676 = vmul.f32 %v1660, %v1660
    %v1677 = vmul.f32 %v1661, %v1661
    %v1678 = vmul.f32 %v1662, %v1662
    %v1679 = vmul.f32 %v1663, %v1663
    %v1680 = vmul.f32 %v1664, %v1664
    %v1681 = vadd.f32 %v1665, %v1669
    %v1682 = vadd.f32 %v1681, %v1673
    %v1683 = vadd.f32 %v1682, %v1677
    %v1684 = vrot.slane %v1683, 4
    %v1685 = vadd.f32 %v1683, %v1684
    %v1686 = vrot.slane %v1685, 2
    %v1687 = vadd.f32 %v1685, %v1686
    %v1688 = vrot.slane %v1687, 1
    %v1689 = vadd.f32 %v1687, %v1688
    %v1690 = vadd.f32 %v1666, %v1670
    %v1691 = vadd.f32 %v1690, %v1674
    %v1692 = vadd.f32 %v1691, %v1678
    %v1693 = vrot.slane %v1692, 4
    %v1694 = vadd.f32 %v1692, %v1693
    %v1695 = vrot.slane %v1694, 2
    %v1696 = vadd.f32 %v1694, %v1695
    %v1697 = vrot.slane %v1696, 1
    %v1698 = vadd.f32 %v1696, %v1697
    %v1699 = vadd.f32 %v1667, %v1671
    %v1700 = vadd.f32 %v1699, %v1675
    %v1701 = vadd.f32 %v1700, %v1679
    %v1702 = vrot.slane %v1701, 4
    %v1703 = vadd.f32 %v1701, %v1702
    %v1704 = vrot.slane %v1703, 2
    %v1705 = vadd.f32 %v1703, %v1704
    %v1706 = vrot.slane %v1705, 1
    %v1707 = vadd.f32 %v1705, %v1706
    %v1708 = vadd.f32 %v1668, %v1672
    %v1709 = vadd.f32 %v1708, %v1676
    %v1710 = vadd.f32 %v1709, %v1680
    %v1711 = vrot.slane %v1710, 4
    %v1712 = vadd.f32 %v1710, %v1711
    %v1713 = vrot.slane %v1712, 2
    %v1714 = vadd.f32 %v1712, %v1713
    %v1715 = vrot.slane %v1714, 1
    %v1716 = vadd.f32 %v1714, %v1715
    %v1717 = vmul.f32 %v1689, %v1644
    %v1718 = vmul.f32 %v1698, %v1644
    %v1719 = vmul.f32 %v1707, %v1644
    %v1720 = vmul.f32 %v1716, %v1644
    %v1721 = vld [vmem:[%s4] sm:$0xf]
    %v1722 = vadd.f32 %v1717, 1e-05
    %v1723 = vadd.f32 %v1718, 1e-05
    %v1724 = vadd.f32 %v1719, 1e-05
    %v1725 = vadd.f32 %v1720, 1e-05
    %v1726 = vrsqrt.pop %v1722
    %v1727 = vrsqrt.pop %v1723
    %v1728 = vrsqrt.pop %v1724
    %v1729 = vrsqrt.pop %v1725
    %v1734 = vcombine.low %v1726, %v1727
    %v1735 = vcombine.low %v1728, %v1729
    %v1737 = vunpack.c.l.s4 1966171168
    %v1738 = vunpack.c.0.s8 %v1737
    %v1739 = vlaneseq
    %v1740 = vshrl.u32 %v1739, 7
    %v1741 = vsub.s32 %v1738, %v1740
    %v1742 = vrot.slane %v1734, %v1741
    %v1744 = vunpack.c.l.s4 1966171168
    %v1745 = vunpack.c.0.s8 %v1744
    %v1746 = vlaneseq
    %v1747 = vshrl.u32 %v1746, 7
    %v1748 = vsub.s32 %v1745, %v1747
    %v1749 = vrot.slane %v1735, %v1748
    %v1750 = vcombine.low %v1742, %v1749
    %v1752 = vunpack.c.l.s4 1966171168
    %v1753 = vunpack.c.0.s8 %v1752
    %v1754 = vlaneseq
    %v1755 = vshrl.u32 %v1754, 7
    %v1756 = vsub.s32 %v1753, %v1755
    %v1757 = vrot.slane %v1750, %v1756
    %v1759 = vmul.f32 %v1721, %v1757
    %v1761 = vlaneseq
    %v1762 = vshrl.u32 %v1761, 7
    %v1763 = vsub.s32 0, %v1762
    %v1764 = vrot.slane %v1759, %v1763
    %v1765 = vlaneseq
    %v1766 = vshrl.u32 %v1765, 7
    %v1767 = vsub.s32 1, %v1766
    %v1768 = vrot.slane %v1759, %v1767
    %v1769 = vlaneseq
    %v1770 = vshrl.u32 %v1769, 7
    %v1771 = vsub.s32 2, %v1770
    %v1772 = vrot.slane %v1759, %v1771
    %v1773 = vlaneseq
    %v1774 = vshrl.u32 %v1773, 7
    %v1775 = vsub.s32 3, %v1774
    %v1776 = vrot.slane %v1759, %v1775
    %v1781 = vmul.f32 %v1649, %v1764
    %v1782 = vmul.f32 %v1650, %v1768
    %v1783 = vmul.f32 %v1651, %v1772
    %v1784 = vmul.f32 %v1652, %v1776
    %v1785 = vmul.f32 %v1653, %v1764
    %v1786 = vmul.f32 %v1654, %v1768
    %v1787 = vmul.f32 %v1655, %v1772
    %v1788 = vmul.f32 %v1656, %v1776
    %v1789 = vmul.f32 %v1657, %v1764
    %v1790 = vmul.f32 %v1658, %v1768
    %v1791 = vmul.f32 %v1659, %v1772
    %v1792 = vmul.f32 %v1660, %v1776
    %v1793 = vmul.f32 %v1661, %v1764
    %v1794 = vmul.f32 %v1662, %v1768
    %v1795 = vmul.f32 %v1663, %v1772
    %v1796 = vmul.f32 %v1664, %v1776
    %v1797 = vld [vmem:[%s5] sm:$0xf]
    %v1799 = vlaneseq
    %v1800 = vshrl.u32 %v1799, 7
    %v1801 = vsub.s32 0, %v1800
    %v1802 = vrot.slane %v1797, %v1801
    %v1803 = vlaneseq
    %v1804 = vshrl.u32 %v1803, 7
    %v1805 = vsub.s32 1, %v1804
    %v1806 = vrot.slane %v1797, %v1805
    %v1807 = vlaneseq
    %v1808 = vshrl.u32 %v1807, 7
    %v1809 = vsub.s32 2, %v1808
    %v1810 = vrot.slane %v1797, %v1809
    %v1811 = vlaneseq
    %v1812 = vshrl.u32 %v1811, 7
    %v1813 = vsub.s32 3, %v1812
    %v1814 = vrot.slane %v1797, %v1813
    %v1819 = vadd.f32 %v1781, %v1802
    %v1820 = vadd.f32 %v1782, %v1806
    %v1821 = vadd.f32 %v1783, %v1810
    %v1822 = vadd.f32 %v1784, %v1814
    %v1823 = vadd.f32 %v1785, %v1802
    %v1824 = vadd.f32 %v1786, %v1806
    %v1825 = vadd.f32 %v1787, %v1810
    %v1826 = vadd.f32 %v1788, %v1814
    %v1827 = vadd.f32 %v1789, %v1802
    %v1828 = vadd.f32 %v1790, %v1806
    %v1829 = vadd.f32 %v1791, %v1810
    %v1830 = vadd.f32 %v1792, %v1814
    %v1831 = vadd.f32 %v1793, %v1802
    %v1832 = vadd.f32 %v1794, %v1806
    %v1833 = vadd.f32 %v1795, %v1810
    %v1834 = vadd.f32 %v1796, %v1814
    %vm1835 = vcmp.gt.f32.partialorder %v1819, 0.0
    %vm1836 = vcmp.gt.f32.partialorder %v1820, 0.0
    %vm1837 = vcmp.gt.f32.partialorder %v1821, 0.0
    %vm1838 = vcmp.gt.f32.partialorder %v1822, 0.0
    %vm1839 = vcmp.gt.f32.partialorder %v1823, 0.0
    %vm1840 = vcmp.gt.f32.partialorder %v1824, 0.0
    %vm1841 = vcmp.gt.f32.partialorder %v1825, 0.0
    %vm1842 = vcmp.gt.f32.partialorder %v1826, 0.0
    %vm1843 = vcmp.gt.f32.partialorder %v1827, 0.0
    %vm1844 = vcmp.gt.f32.partialorder %v1828, 0.0
    %vm1845 = vcmp.gt.f32.partialorder %v1829, 0.0
    %vm1846 = vcmp.gt.f32.partialorder %v1830, 0.0
    %vm1847 = vcmp.gt.f32.partialorder %v1831, 0.0
    %vm1848 = vcmp.gt.f32.partialorder %v1832, 0.0
    %vm1849 = vcmp.gt.f32.partialorder %v1833, 0.0
    %vm1850 = vcmp.gt.f32.partialorder %v1834, 0.0
    %v1851 = vmul.f32 %v1819, 0.2
    %v1852 = vmul.f32 %v1820, 0.2
    %v1853 = vmul.f32 %v1821, 0.2
    %v1854 = vmul.f32 %v1822, 0.2
    %v1855 = vmul.f32 %v1823, 0.2
    %v1856 = vmul.f32 %v1824, 0.2
    %v1857 = vmul.f32 %v1825, 0.2
    %v1858 = vmul.f32 %v1826, 0.2
    %v1859 = vmul.f32 %v1827, 0.2
    %v1860 = vmul.f32 %v1828, 0.2
    %v1861 = vmul.f32 %v1829, 0.2
    %v1862 = vmul.f32 %v1830, 0.2
    %v1863 = vmul.f32 %v1831, 0.2
    %v1864 = vmul.f32 %v1832, 0.2
    %v1865 = vmul.f32 %v1833, 0.2
    %v1866 = vmul.f32 %v1834, 0.2
    %v1867 = vsel %vm1835, %v1819, %v1851
    %v1868 = vsel %vm1836, %v1820, %v1852
    %v1869 = vsel %vm1837, %v1821, %v1853
    %v1870 = vsel %vm1838, %v1822, %v1854
    %v1871 = vsel %vm1839, %v1823, %v1855
    %v1872 = vsel %vm1840, %v1824, %v1856
    %v1873 = vsel %vm1841, %v1825, %v1857
    %v1874 = vsel %vm1842, %v1826, %v1858
    %v1875 = vsel %vm1843, %v1827, %v1859
    %v1876 = vsel %vm1844, %v1828, %v1860
    %v1877 = vsel %vm1845, %v1829, %v1861
    %v1878 = vsel %vm1846, %v1830, %v1862
    %v1879 = vsel %vm1847, %v1831, %v1863
    %v1880 = vsel %vm1848, %v1832, %v1864
    %v1881 = vsel %vm1849, %v1833, %v1865
    %v1882 = vsel %vm1850, %v1834, %v1866
    %v1883 = vpack.c.bf16 %v1871, %v1867
    %v1884 = vpack.c.bf16 %v1872, %v1868
    %v1885 = vpack.c.bf16 %v1873, %v1869
    %v1886 = vpack.c.bf16 %v1874, %v1870
    %v1887 = vpack.c.bf16 %v1879, %v1875
    %v1888 = vpack.c.bf16 %v1880, %v1876
    %v1889 = vpack.c.bf16 %v1881, %v1877
    %v1890 = vpack.c.bf16 %v1882, %v1878
    %v1891 = vld [vmem:[%s6] sm:$0xf]
    %v1892 = vld [vmem:[%s6 + $0x4] sm:$0xf]
    %v1893 = vld [vmem:[%s6 + $0x8] sm:$0xf]
    %v1894 = vld [vmem:[%s6 + $0xc] sm:$0xf]
    %v1895 = vld [vmem:[%s6 + $0x10] sm:$0xf]
    %v1896 = vld [vmem:[%s6 + $0x14] sm:$0xf]
    %v1897 = vld [vmem:[%s6 + $0x18] sm:$0xf]
    %v1898 = vld [vmem:[%s6 + $0x1c] sm:$0xf]
    %v1899 = vld [vmem:[%s6 + $0x20] sm:$0xf]
    %v1900 = vld [vmem:[%s6 + $0x24] sm:$0xf]
    %v1901 = vld [vmem:[%s6 + $0x28] sm:$0xf]
    %v1902 = vld [vmem:[%s6 + $0x2c] sm:$0xf]
    %v1903 = vld [vmem:[%s6 + $0x30] sm:$0xf]
    %v1904 = vld [vmem:[%s6 + $0x34] sm:$0xf]
    %v1905 = vld [vmem:[%s6 + $0x38] sm:$0xf]
    %v1906 = vld [vmem:[%s6 + $0x3c] sm:$0xf]
    %v1907 = vld [vmem:[%s6 + $0x40] sm:$0xf]
    %v1908 = vld [vmem:[%s6 + $0x44] sm:$0xf]
    %v1909 = vld [vmem:[%s6 + $0x48] sm:$0xf]
    %v1910 = vld [vmem:[%s6 + $0x4c] sm:$0xf]
    %v1911 = vld [vmem:[%s6 + $0x50] sm:$0xf]
    %v1912 = vld [vmem:[%s6 + $0x54] sm:$0xf]
    %v1913 = vld [vmem:[%s6 + $0x58] sm:$0xf]
    %v1914 = vld [vmem:[%s6 + $0x5c] sm:$0xf]
    %v1915 = vld [vmem:[%s6 + $0x60] sm:$0xf]
    %v1916 = vld [vmem:[%s6 + $0x64] sm:$0xf]
    %v1917 = vld [vmem:[%s6 + $0x68] sm:$0xf]
    %v1918 = vld [vmem:[%s6 + $0x6c] sm:$0xf]
    %v1919 = vld [vmem:[%s6 + $0x70] sm:$0xf]
    %v1920 = vld [vmem:[%s6 + $0x74] sm:$0xf]
    %v1921 = vld [vmem:[%s6 + $0x78] sm:$0xf]
    %v1922 = vld [vmem:[%s6 + $0x7c] sm:$0xf]
    %v1923 = vld [vmem:[%s6 + $0x80] sm:$0xf]
    %v1924 = vld [vmem:[%s6 + $0x84] sm:$0xf]
    %v1925 = vld [vmem:[%s6 + $0x88] sm:$0xf]
    %v1926 = vld [vmem:[%s6 + $0x8c] sm:$0xf]
    %v1927 = vld [vmem:[%s6 + $0x90] sm:$0xf]
    %v1928 = vld [vmem:[%s6 + $0x94] sm:$0xf]
    %v1929 = vld [vmem:[%s6 + $0x98] sm:$0xf]
    %v1930 = vld [vmem:[%s6 + $0x9c] sm:$0xf]
    %v1931 = vld [vmem:[%s6 + $0xa0] sm:$0xf]
    %v1932 = vld [vmem:[%s6 + $0xa4] sm:$0xf]
    %v1933 = vld [vmem:[%s6 + $0xa8] sm:$0xf]
    %v1934 = vld [vmem:[%s6 + $0xac] sm:$0xf]
    %v1935 = vld [vmem:[%s6 + $0xb0] sm:$0xf]
    %v1936 = vld [vmem:[%s6 + $0xb4] sm:$0xf]
    %v1937 = vld [vmem:[%s6 + $0xb8] sm:$0xf]
    %v1938 = vld [vmem:[%s6 + $0xbc] sm:$0xf]
    %v1939 = vld [vmem:[%s6 + $0xc0] sm:$0xf]
    %v1940 = vld [vmem:[%s6 + $0xc4] sm:$0xf]
    %v1941 = vld [vmem:[%s6 + $0xc8] sm:$0xf]
    %v1942 = vld [vmem:[%s6 + $0xcc] sm:$0xf]
    %v1943 = vld [vmem:[%s6 + $0xd0] sm:$0xf]
    %v1944 = vld [vmem:[%s6 + $0xd4] sm:$0xf]
    %v1945 = vld [vmem:[%s6 + $0xd8] sm:$0xf]
    %v1946 = vld [vmem:[%s6 + $0xdc] sm:$0xf]
    %v1947 = vld [vmem:[%s6 + $0xe0] sm:$0xf]
    %v1948 = vld [vmem:[%s6 + $0xe4] sm:$0xf]
    %v1949 = vld [vmem:[%s6 + $0xe8] sm:$0xf]
    %v1950 = vld [vmem:[%s6 + $0xec] sm:$0xf]
    %v1951 = vld [vmem:[%s6 + $0xf0] sm:$0xf]
    %v1952 = vld [vmem:[%s6 + $0xf4] sm:$0xf]
    %v1953 = vld [vmem:[%s6 + $0xf8] sm:$0xf]
    %v1954 = vld [vmem:[%s6 + $0xfc] sm:$0xf]
    %v1955 = vld [vmem:[%s7] sm:$0x1]
    %v1957 = vlaneseq
    %v1958 = vshrl.u32 %v1957, 7
    %v1959 = vsub.s32 0, %v1958
    %v1960 = vrot.slane %v1955, %v1959
    %v2026 = vunpack.c.l.b16 %v1891
    %v2027 = vunpack.c.l.b16 %v1892
    %v2028 = vunpack.c.l.b16 %v1893
    %v2029 = vunpack.c.l.b16 %v1894
    %v2030 = vunpack.c.l.b16 %v1895
    %v2031 = vunpack.c.l.b16 %v1896
    %v2032 = vunpack.c.l.b16 %v1897
    %v2033 = vunpack.c.l.b16 %v1898
    %v2034 = vunpack.c.l.b16 %v1899
    %v2035 = vunpack.c.l.b16 %v1900
    %v2036 = vunpack.c.l.b16 %v1901
    %v2037 = vunpack.c.l.b16 %v1902
    %v2038 = vunpack.c.l.b16 %v1903
    %v2039 = vunpack.c.l.b16 %v1904
    %v2040 = vunpack.c.l.b16 %v1905
    %v2041 = vunpack.c.l.b16 %v1906
    %v2042 = vunpack.c.l.b16 %v1907
    %v2043 = vunpack.c.l.b16 %v1908
    %v2044 = vunpack.c.l.b16 %v1909
    %v2045 = vunpack.c.l.b16 %v1910
    %v2046 = vunpack.c.l.b16 %v1911
    %v2047 = vunpack.c.l.b16 %v1912
    %v2048 = vunpack.c.l.b16 %v1913
    %v2049 = vunpack.c.l.b16 %v1914
    %v2050 = vunpack.c.l.b16 %v1915
    %v2051 = vunpack.c.l.b16 %v1916
    %v2052 = vunpack.c.l.b16 %v1917
    %v2053 = vunpack.c.l.b16 %v1918
    %v2054 = vunpack.c.l.b16 %v1919
    %v2055 = vunpack.c.l.b16 %v1920
    %v2056 = vunpack.c.l.b16 %v1921
    %v2057 = vunpack.c.l.b16 %v1922
    %v2058 = vunpack.c.l.b16 %v1923
    %v2059 = vunpack.c.l.b16 %v1924
    %v2060 = vunpack.c.l.b16 %v1925
    %v2061 = vunpack.c.l.b16 %v1926
    %v2062 = vunpack.c.l.b16 %v1927
    %v2063 = vunpack.c.l.b16 %v1928
    %v2064 = vunpack.c.l.b16 %v1929
    %v2065 = vunpack.c.l.b16 %v1930
    %v2066 = vunpack.c.l.b16 %v1931
    %v2067 = vunpack.c.l.b16 %v1932
    %v2068 = vunpack.c.l.b16 %v1933
    %v2069 = vunpack.c.l.b16 %v1934
    %v2070 = vunpack.c.l.b16 %v1935
    %v2071 = vunpack.c.l.b16 %v1936
    %v2072 = vunpack.c.l.b16 %v1937
    %v2073 = vunpack.c.l.b16 %v1938
    %v2074 = vunpack.c.l.b16 %v1939
    %v2075 = vunpack.c.l.b16 %v1940
    %v2076 = vunpack.c.l.b16 %v1941
    %v2077 = vunpack.c.l.b16 %v1942
    %v2078 = vunpack.c.l.b16 %v1943
    %v2079 = vunpack.c.l.b16 %v1944
    %v2080 = vunpack.c.l.b16 %v1945
    %v2081 = vunpack.c.l.b16 %v1946
    %v2082 = vunpack.c.l.b16 %v1947
    %v2083 = vunpack.c.l.b16 %v1948
    %v2084 = vunpack.c.l.b16 %v1949
    %v2085 = vunpack.c.l.b16 %v1950
    %v2086 = vunpack.c.l.b16 %v1951
    %v2087 = vunpack.c.l.b16 %v1952
    %v2088 = vunpack.c.l.b16 %v1953
    %v2089 = vunpack.c.l.b16 %v1954
    %v2090 = vpack.c.b16 %v2027, %v2026
    %v2091 = vpack.c.b16 %v2029, %v2028
    %v2092 = vpack.c.b16 %v2031, %v2030
    %v2093 = vpack.c.b16 %v2033, %v2032
    %v2094 = vpack.c.b16 %v2035, %v2034
    %v2095 = vpack.c.b16 %v2037, %v2036
    %v2096 = vpack.c.b16 %v2039, %v2038
    %v2097 = vpack.c.b16 %v2041, %v2040
    %v2098 = vpack.c.b16 %v2043, %v2042
    %v2099 = vpack.c.b16 %v2045, %v2044
    %v2100 = vpack.c.b16 %v2047, %v2046
    %v2101 = vpack.c.b16 %v2049, %v2048
    %v2102 = vpack.c.b16 %v2051, %v2050
    %v2103 = vpack.c.b16 %v2053, %v2052
    %v2104 = vpack.c.b16 %v2055, %v2054
    %v2105 = vpack.c.b16 %v2057, %v2056
    %v2106 = vpack.c.b16 %v2059, %v2058
    %v2107 = vpack.c.b16 %v2061, %v2060
    %v2108 = vpack.c.b16 %v2063, %v2062
    %v2109 = vpack.c.b16 %v2065, %v2064
    %v2110 = vpack.c.b16 %v2067, %v2066
    %v2111 = vpack.c.b16 %v2069, %v2068
    %v2112 = vpack.c.b16 %v2071, %v2070
    %v2113 = vpack.c.b16 %v2073, %v2072
    %v2114 = vpack.c.b16 %v2075, %v2074
    %v2115 = vpack.c.b16 %v2077, %v2076
    %v2116 = vpack.c.b16 %v2079, %v2078
    %v2117 = vpack.c.b16 %v2081, %v2080
    %v2118 = vpack.c.b16 %v2083, %v2082
    %v2119 = vpack.c.b16 %v2085, %v2084
    %v2120 = vpack.c.b16 %v2087, %v2086
    %v2121 = vpack.c.b16 %v2089, %v2088
    %2154 = vmatprep.subr.bf16.mxu0 0
    %2155 = vmatpush1.bf16.msra.mxu0 %v2090
    %2156 = vmatprep.subr.bf16.mxu0 0
    %2157 = vmatpush1.bf16.msra.mxu0 %v2091
    %2158 = vmatprep.subr.bf16.mxu0 0
    %2159 = vmatpush1.bf16.msra.mxu0 %v2092
    %2160 = vmatprep.subr.bf16.mxu0 0
    %2161 = vmatpush1.bf16.msra.mxu0 %v2093
    %2162 = vmatprep.subr.bf16.mxu0 0
    %2163 = vmatpush1.bf16.msra.mxu0 %v2094
    %2164 = vmatprep.subr.bf16.mxu0 0
    %2165 = vmatpush1.bf16.msra.mxu0 %v2095
    %2166 = vmatprep.subr.bf16.mxu0 0
    %2167 = vmatpush1.bf16.msra.mxu0 %v2096
    %2168 = vmatprep.subr.bf16.mxu0 0
    %2169 = vmatpush1.bf16.msra.mxu0 %v2097
    %2170 = vmatprep.subr.bf16.mxu0 0
    %2171 = vmatpush1.bf16.msra.mxu0 %v2098
    %2172 = vmatprep.subr.bf16.mxu0 0
    %2173 = vmatpush1.bf16.msra.mxu0 %v2099
    %2174 = vmatprep.subr.bf16.mxu0 0
    %2175 = vmatpush1.bf16.msra.mxu0 %v2100
    %2176 = vmatprep.subr.bf16.mxu0 0
    %2177 = vmatpush1.bf16.msra.mxu0 %v2101
    %2178 = vmatprep.subr.bf16.mxu0 0
    %2179 = vmatpush1.bf16.msra.mxu0 %v2102
    %2180 = vmatprep.subr.bf16.mxu0 0
    %2181 = vmatpush1.bf16.msra.mxu0 %v2103
    %2182 = vmatprep.subr.bf16.mxu0 0
    %2183 = vmatpush1.bf16.msra.mxu0 %v2104
    %2184 = vmatprep.subr.bf16.mxu0 0
    %2185 = vmatpush1.bf16.msra.mxu0 %v2105
    %2186 = vmatprep.mubr.bf16.mxu0 %v1884
    %2187 = vmatmul.mubr.bf16.gmra.mrb[0].mxu0 %v1883
    %v2188 = vpop.f32.mrb[0].mxu0
    %v2189 = vadd.f32 %v1960, %v2188
    %v2190 = vpop.f32.mrb[0].mxu0
    %v2191 = vpop.f32.mrb[0].mxu0
    %v2192 = vadd.f32 %v1960, %v2191
    %v2193 = vpop.f32.mrb[0].mxu0
    %2194 = vmatprep.mubr.bf16.mxu0 %v1888
    %2195 = vmatmul.mubr.bf16.gmra.mrb[0].mxu0 %v1887
    %v2196 = vpop.f32.mrb[0].mxu0
    %v2197 = vadd.f32 %v1960, %v2196
    %v2198 = vpop.f32.mrb[0].mxu0
    %v2199 = vpop.f32.mrb[0].mxu0
    %v2200 = vadd.f32 %v1960, %v2199
    %v2201 = vpop.f32.mrb[0].mxu0
    %2202 = vdwg.mxu0
    %2203 = vmatprep.subr.bf16.mxu0 0
    %2204 = vmatpush1.bf16.msra.mxu0 %v2106
    %2205 = vmatprep.subr.bf16.mxu0 0
    %2206 = vmatpush1.bf16.msra.mxu0 %v2107
    %2207 = vmatprep.subr.bf16.mxu0 0
    %2208 = vmatpush1.bf16.msra.mxu0 %v2108
    %2209 = vmatprep.subr.bf16.mxu0 0
    %2210 = vmatpush1.bf16.msra.mxu0 %v2109
    %2211 = vmatprep.subr.bf16.mxu0 0
    %2212 = vmatpush1.bf16.msra.mxu0 %v2110
    %2213 = vmatprep.subr.bf16.mxu0 0
    %2214 = vmatpush1.bf16.msra.mxu0 %v2111
    %2215 = vmatprep.subr.bf16.mxu0 0
    %2216 = vmatpush1.bf16.msra.mxu0 %v2112
    %2217 = vmatprep.subr.bf16.mxu0 0
    %2218 = vmatpush1.bf16.msra.mxu0 %v2113
    %2219 = vmatprep.subr.bf16.mxu0 0
    %2220 = vmatpush1.bf16.msra.mxu0 %v2114
    %2221 = vmatprep.subr.bf16.mxu0 0
    %2222 = vmatpush1.bf16.msra.mxu0 %v2115
    %2223 = vmatprep.subr.bf16.mxu0 0
    %2224 = vmatpush1.bf16.msra.mxu0 %v2116
    %2225 = vmatprep.subr.bf16.mxu0 0
    %2226 = vmatpush1.bf16.msra.mxu0 %v2117
    %2227 = vmatprep.subr.bf16.mxu0 0
    %2228 = vmatpush1.bf16.msra.mxu0 %v2118
    %2229 = vmatprep.subr.bf16.mxu0 0
    %2230 = vmatpush1.bf16.msra.mxu0 %v2119
    %2231 = vmatprep.subr.bf16.mxu0 0
    %2232 = vmatpush1.bf16.msra.mxu0 %v2120
    %2233 = vmatprep.subr.bf16.mxu0 0
    %2234 = vmatpush1.bf16.msra.mxu0 %v2121
    %2235 = vmatprep.mubr.bf16.mxu0 %v1886
    %2236 = vmatmul.mubr.bf16.gmra.mrb[0].mxu0 %v1885
    %v2237 = vpop.f32.mrb[0].mxu0
    %v2238 = vadd.f32 %v2189, %v2237
    %v2239 = vpop.f32.mrb[0].mxu0
    %v2240 = vpop.f32.mrb[0].mxu0
    %v2241 = vadd.f32 %v2192, %v2240
    %v2242 = vpop.f32.mrb[0].mxu0
    %2243 = vmatprep.mubr.bf16.mxu0 %v1890
    %2244 = vmatmul.mubr.bf16.gmra.mrb[0].mxu0 %v1889
    %v2245 = vpop.f32.mrb[0].mxu0
    %v2246 = vadd.f32 %v2197, %v2245
    %v2247 = vpop.f32.mrb[0].mxu0
    %v2248 = vpop.f32.mrb[0].mxu0
    %v2249 = vadd.f32 %v2200, %v2248
    %v2250 = vpop.f32.mrb[0].mxu0
    %2251 = vdwg.mxu0
    %v2252 = vld [vmem:[%s8] sm:$0xff]
    %v2253 = vld [vmem:[%s8 + $0x8] sm:$0xff]
    %v2254 = vld [vmem:[%s8 + $0x10] sm:$0xff]
    %v2255 = vld [vmem:[%s8 + $0x18] sm:$0xff]
    %v2256 = vmul.f32 %v2238, 0.5
    %v2257 = vmul.f32 %v2241, 0.5
    %v2258 = vmul.f32 %v2246, 0.5
    %v2259 = vmul.f32 %v2249, 0.5
    %v2260 = vmul.f32 %v2256, 1.442695
    %v2261 = vpow.pop %v2260
    %v2262 = vmul.f32 %v2257, 1.442695
    %v2263 = vpow.pop %v2262
    %v2264 = vmul.f32 %v2258, 1.442695
    %v2265 = vpow.pop %v2264
    %v2266 = vmul.f32 %v2259, 1.442695
    %v2267 = vpow.pop %v2266
    %2272 = vrot.lane.b32.xlu0 %v2261, 96
    %v2273 = vpop.permute.xlu0 %2272
    %2274 = vrot.lane.b32.xlu0 %v2263, 96
    %v2275 = vpop.permute.xlu0 %2274
    %2276 = vrot.lane.b32.xlu0 %v2265, 96
    %v2277 = vpop.permute.xlu0 %2276
    %2278 = vrot.lane.b32.xlu0 %v2267, 96
    %v2279 = vpop.permute.xlu0 %2278
    %v2284 = vmul.f32 %v2252, %v2273
    %v2285 = vmul.f32 %v2253, %v2275
    %v2286 = vmul.f32 %v2254, %v2277
    %v2287 = vmul.f32 %v2255, %v2279
    %v2288 = vadd.f32 %v2284, %v2238
    %v2289 = vadd.f32 %v2285, %v2241
    %v2290 = vadd.f32 %v2286, %v2246
    %v2291 = vadd.f32 %v2287, %v2249
    %vm2292 = vcmask 261120
    %2293 = vst.msk [vmem:[#allocation5] sm:$0xff] %vm2292, %v2288
    %2294 = vst.msk [vmem:[#allocation5 + $0x8] sm:$0xff] %vm2292, %v2289
    %2295 = vst.msk [vmem:[#allocation5 + $0x10] sm:$0xff] %vm2292, %v2290
    %2296 = vst.msk [vmem:[#allocation5 + $0x18] sm:$0xff] %vm2292, %v2291
    // Predicated region
    $region42: #{encoder_forward.1} parent=1 // pred_check
      _
    $region43: #{encoder_forward.1} parent=1 // pred_check_branch
      %2298 = sbr.rel (0) target = $region45
    $region44: #{encoder_forward.1} parent=1 // pred_region
      %s2300 = ssub.s32 512, 512
      %2301 = vsyncadd [#allocation4], %s2300
      %s2302 = sshll.u32 [#allocation5], 4
      %s2303 = int_to_ptr.vmem [resolvable:$true] %s2302
      %2308 = dma.vmem_to_hbm [thread:$0]  %s2303, 512, %s9, [#allocation4], 128, 128, 8
    $region45: #{encoder_forward.1} parent=1 // pred_fallthru
      _
    // Predicated region
    $region46: #{encoder_forward.1} parent=1 // pred_check
      _
    $region47: #{encoder_forward.1} parent=1 // pred_check_branch
      %2310 = sbr.rel (0) target = $region49
    $region48: #{encoder_forward.1} parent=1 // pred_region
      %2311 = dma.done [#allocation4], 512
    $region49: #{encoder_forward.1} parent=1 // pred_fallthru
      _
    %2312 = vsyncpa [#allocation3], 1
    %2313 = vsyncpa [#allocation4], 1

</llo_original>
